<compile_context>
chip_gen: v7x
topology: tpu7x:2x2x1
jax: 0.10.0
libtpu: 0.0.40
codegen_flags: <defaults>
</compile_context>

<pallas_src>
import math

import jax
import jax.numpy as jnp
import numpy as np
from jax.experimental import pallas as pl
from jax.experimental.pallas import tpu as pltpu


def _make_conv_in_elu_kernel(Bt, H, W, K, cin, cout, eps=1e-5):
    HW = H * W
    pad = K // 2

    def kernel(x_ref, w_ref, p_ref, o_ref, col_ref):
        # x_ref  : (Bt, H, W, Cin)          bf16  (unpadded NHWC)
        # w_ref  : (K*K*Cin, Cout)          bf16  (tap-major (kh, kw), then Cin)
        # p_ref  : (3, Cout)                f32   rows: [conv bias, IN gamma, IN beta]
        # o_ref  : (Bt, Cout, H*W)          f32   (lane-dense along H*W)
        # col_ref: (Bt, H, W, K*K*Cin) VMEM bf16  im2col staging scratch

        # --- 1) stage im2col patches; zero-init supplies the spatial zero-pad ---
        col_ref[...] = jnp.zeros_like(col_ref)
        for kh in range(K):
            dh = kh - pad
            i0, i1 = max(0, -dh), min(H, H - dh)
            for kw in range(K):
                dw = kw - pad
                j0, j1 = max(0, -dw), min(W, W - dw)
                t = kh * K + kw
                col_ref[:, i0:i1, j0:j1, t * cin:(t + 1) * cin] = (
                    x_ref[:, i0 + dh:i1 + dh, j0 + dw:j1 + dw, :])

        # --- 2) one MXU matmul over the full K*K*Cin contraction (f32 acc) ---
        patches = col_ref[...].reshape(Bt * HW, K * K * cin)
        y = jnp.dot(patches, w_ref[...], preferred_element_type=jnp.float32)

        p = p_ref[...]                       # (3, Cout) f32
        y = y + p[0:1, :]                    # conv bias

        # --- 3) ELU (alpha = 1), f32 ---
        # NOTE: jnp.expm1 would be marginally more accurate near 0; exp-1 is
        # used for guaranteed Mosaic lowering (abs error <1e-7, far below tol).
        y = jnp.where(y > 0.0, y, jnp.exp(y) - 1.0)

        # --- 4) per-image InstanceNorm (one-pass sum / sum-of-squares), f32 ---
        inv_hw = 1.0 / float(HW)
        for b in range(Bt):
            yi = y[b * HW:(b + 1) * HW, :]                       # (HW, Cout)
            mean = jnp.sum(yi, axis=0, keepdims=True) * inv_hw   # (1, Cout)
            ex2 = jnp.sum(yi * yi, axis=0, keepdims=True) * inv_hw
            var = jnp.maximum(ex2 - mean * mean, 0.0)
            scale = jax.lax.rsqrt(var + eps) * p[1:2, :]         # gamma / std
            shift = p[2:3, :] - mean * scale                     # beta - mean*scale
            # lane-dense (Cout, HW) store: HW is a multiple of 128 -> unmasked vst,
            # and the wrapper NCHW view is a free reshape (no HBM transpose pass).
            o_ref[b] = jnp.transpose(yi * scale + shift, (1, 0)).astype(o_ref.dtype)

    return kernel


def _pick_batch_tile(B, H, W, cin, cout, K, target_m=1024, vmem_budget=24 << 20):
    """Largest batch tile that (a) divides B, (b) keeps >=2 parallel grid steps
    when B >= 2 (so both v7x TensorCores get work), (c) fits a VMEM budget."""
    HW = H * W

    def vmem_bytes(bt):
        x_blk = bt * H * W * cin * 2
        col = bt * HW * K * K * cin * 2
        out_blk = bt * cout * HW * 4
        w_blk = K * K * cin * cout * 2
        return 2 * (x_blk + out_blk + w_blk) + col   # double-buffered I/O + scratch

    best = 1
    for bt in range(1, B + 1):
        if B % bt:
            continue
        if B >= 2 and B // bt < 2:
            continue
        if vmem_bytes(bt) > vmem_budget:
            continue
        best = bt
        if bt * HW >= target_m:
            break
    return best


def conv_block_forward(x, params, kernel_size, batch_tile=None):
    """Pallas forward of `conv`:  x (B, Cin, H, W) f32  ->  (B, Cout, H, W) f32."""
    B, Cin, H, W = x.shape
    K = kernel_size
    Cout = params["w"].shape[0]
    HW = H * W

    Bt = batch_tile if batch_tile is not None else _pick_batch_tile(B, H, W, Cin, Cout, K)
    assert B % Bt == 0, (B, Bt)

    # NCHW -> NHWC (channels lane-dense in the input), bf16 for the MXU.
    xh = jnp.transpose(x, (0, 2, 3, 1)).astype(jnp.bfloat16)

    # Conv2d weight (Cout, Cin, K, K) -> (K*K*Cin, Cout), flat index = (kh*K+kw)*Cin + c.
    w2d = jnp.transpose(params["w"], (2, 3, 1, 0)).reshape(K * K * Cin, Cout)
    w2d = w2d.astype(jnp.bfloat16)

    # Pack conv bias / IN gamma / IN beta into one operand: 1 DMA stream instead of 3.
    pkd = jnp.stack([params["b"], params["in_g"], params["in_b"]], axis=0).astype(jnp.float32)

    kernel = _make_conv_in_elu_kernel(Bt, H, W, K, Cin, Cout)

    cost = pl.CostEstimate(
        flops=2 * B * HW * K * K * Cin * Cout,
        transcendentals=B * HW * Cout + B * Cout,               # exp (ELU) + rsqrt (IN)
        bytes_accessed=(xh.size * 2 + w2d.size * 2 + pkd.size * 4
                        + B * Cout * HW * 4),
    )

    out = pl.pallas_call(
        kernel,
        out_shape=jax.ShapeDtypeStruct((B, Cout, HW), jnp.float32),
        grid=(B // Bt,),
        in_specs=[
            pl.BlockSpec((Bt, H, W, Cin), lambda b: (b, 0, 0, 0)),      # NHWC activations
            pl.BlockSpec((K * K * Cin, Cout), lambda b: (0, 0)),        # conv weight
            pl.BlockSpec((3, Cout), lambda b: (0, 0)),                  # bias/gamma/beta
        ],
        out_specs=pl.BlockSpec((Bt, Cout, HW), lambda b: (b, 0, 0)),
        scratch_shapes=[pltpu.VMEM((Bt, H, W, K * K * Cin), jnp.bfloat16)],
        compiler_params=pltpu.CompilerParams(dimension_semantics=("parallel",)),
        cost_estimate=cost,
    )(xh, w2d, pkd)

    # (B, Cout, H*W) -> (B, Cout, H, W): pure reshape, no HBM transpose.
    return out.reshape(B, Cout, H, W)


def conv_block_reference(x, params, kernel_size, eps=1e-5):
    """Pure-JAX reference mirroring the PyTorch forward (for verification)."""
    K = kernel_size
    p = K // 2
    y = jax.lax.conv_general_dilated(
        x, params["w"], (1, 1), [(p, p), (p, p)],
        dimension_numbers=("NCHW", "OIHW", "NCHW"))
    y = y + params["b"].reshape(1, -1, 1, 1)
    y = jnp.where(y > 0, y, jnp.exp(y) - 1.0)                    # ELU
    mu = y.mean(axis=(2, 3), keepdims=True)
    var = ((y - mu) ** 2).mean(axis=(2, 3), keepdims=True)
    yn = (y - mu) / jnp.sqrt(var + eps)
    return yn * params["in_g"].reshape(1, -1, 1, 1) + params["in_b"].reshape(1, -1, 1, 1)


def init_params(key, cin, cout, k):
    """Deterministic synthetic init matching the module's parameter shapes."""
    k1, k2, k3, k4 = jax.random.split(key, 4)
    fan_in = cin * k * k
    return {
        "w": math.sqrt(2.0 / fan_in)
             * jax.random.normal(k1, (cout, cin, k, k), jnp.float32),
        "b": 0.1 * jax.random.normal(k2, (cout,), jnp.float32),
        "in_g": 1.0 + 0.1 * jax.random.normal(k3, (cout,), jnp.float32),
        "in_b": 0.1 * jax.random.normal(k4, (cout,), jnp.float32),
    }


if __name__ == "__main__":
    B, Cin, Cout, K, H, W = 2, 4, 16, 3, 16, 16

    key = jax.random.PRNGKey(0)
    kx, kp = jax.random.split(key)
    x = jax.random.normal(kx, (B, Cin, H, W), jnp.float32)
    params = init_params(kp, Cin, Cout, K)

    out = jax.block_until_ready(conv_block_forward(x, params, K))
    ref = conv_block_reference(x, params, K)
    assert out.shape == (B, Cout, H, W)
    # bf16 matmul inputs with f32 accumulation -> loosened tolerance vs f32 ref.
    np.testing.assert_allclose(np.asarray(out), np.asarray(ref), rtol=2e-2, atol=2e-2)

    # Also exercise the batch-folded path (Bt=2, two parallel grid steps).
    x4 = jax.random.normal(jax.random.PRNGKey(1), (4, Cin, H, W), jnp.float32)
    out4 = jax.block_until_ready(conv_block_forward(x4, params, K))
    ref4 = conv_block_reference(x4, params, K)
    np.testing.assert_allclose(np.asarray(out4), np.asarray(ref4), rtol=2e-2, atol=2e-2)

    print("KERNEL_OK")
</pallas_src>

<mosaic_0001>
module attributes {stable_mosaic.version = 11 : i64} {
  func.func @kernel(%arg0: i32, %arg1: memref<1x16x16x4xbf16, #tpu.memory_space<vmem>>, %arg2: memref<36x16xbf16, #tpu.memory_space<vmem>>, %arg3: memref<3x16xf32, #tpu.memory_space<vmem>>, %arg4: memref<1x16x256xf32, #tpu.memory_space<vmem>>, %arg5: memref<1x16x16x36xbf16, #tpu.memory_space<vmem>>) attributes {dimension_semantics = [#tpu.dimension_semantics<parallel>], iteration_bounds = array<i64: 2>, scalar_prefetch = 0 : i64, scratch_operands = 1 : i64, tpu.core_type = #tpu.core_type<tc>, window_params = [{transform_indices = @transform_0, window_bounds = array<i64: 1, 16, 16, 4>}, {pipeline_mode = #tpu.pipeline_mode<synchronous>, transform_indices = @transform_1, window_bounds = array<i64: 36, 16>}, {pipeline_mode = #tpu.pipeline_mode<synchronous>, transform_indices = @transform_2, window_bounds = array<i64: 3, 16>}, {transform_indices = @transform_3, window_bounds = array<i64: 1, 16, 256>}]} {
    %cst = arith.constant 0.000000e+00 : bf16
    %0 = vector.broadcast %cst : bf16 to vector<1x16x16x36xbf16>
    %c0 = arith.constant 0 : index
    %c0_0 = arith.constant 0 : index
    %c0_1 = arith.constant 0 : index
    %c0_2 = arith.constant 0 : index
    %1 = vector.load %arg5[%c0, %c0_0, %c0_1, %c0_2] : memref<1x16x16x36xbf16, #tpu.memory_space<vmem>>, vector<1x16x16x36xbf16>
    tpu.vector_store %arg5[%c0, %c0_0, %c0_1, %c0_2], %0 {strides = array<i32>} : memref<1x16x16x36xbf16, #tpu.memory_space<vmem>>, vector<1x16x16x36xbf16>,
    %c0_3 = arith.constant 0 : index
    %c0_4 = arith.constant 0 : index
    %c0_5 = arith.constant 0 : index
    %c0_6 = arith.constant 0 : index
    %2 = vector.load %arg1[%c0_3, %c0_4, %c0_5, %c0_6] : memref<1x16x16x4xbf16, #tpu.memory_space<vmem>>, vector<1x15x15x4xbf16>
    %c0_7 = arith.constant 0 : index
    %c1 = arith.constant 1 : index
    %c1_8 = arith.constant 1 : index
    %c0_9 = arith.constant 0 : index
    %3 = vector.load %arg5[%c0_7, %c1, %c1_8, %c0_9] : memref<1x16x16x36xbf16, #tpu.memory_space<vmem>>, vector<1x15x15x4xbf16>
    tpu.vector_store %arg5[%c0_7, %c1, %c1_8, %c0_9], %2 {strides = array<i32>} : memref<1x16x16x36xbf16, #tpu.memory_space<vmem>>, vector<1x15x15x4xbf16>,
    %c0_10 = arith.constant 0 : index
    %c0_11 = arith.constant 0 : index
    %c0_12 = arith.constant 0 : index
    %c0_13 = arith.constant 0 : index
    %4 = vector.load %arg1[%c0_10, %c0_11, %c0_12, %c0_13] : memref<1x16x16x4xbf16, #tpu.memory_space<vmem>>, vector<1x15x16x4xbf16>
    %c0_14 = arith.constant 0 : index
    %c1_15 = arith.constant 1 : index
    %c0_16 = arith.constant 0 : index
    %c4 = arith.constant 4 : index
    %5 = vector.load %arg5[%c0_14, %c1_15, %c0_16, %c4] : memref<1x16x16x36xbf16, #tpu.memory_space<vmem>>, vector<1x15x16x4xbf16>
    tpu.vector_store %arg5[%c0_14, %c1_15, %c0_16, %c4], %4 {strides = array<i32>} : memref<1x16x16x36xbf16, #tpu.memory_space<vmem>>, vector<1x15x16x4xbf16>,
    %c0_17 = arith.constant 0 : index
    %c0_18 = arith.constant 0 : index
    %c1_19 = arith.constant 1 : index
    %c0_20 = arith.constant 0 : index
    %6 = vector.load %arg1[%c0_17, %c0_18, %c1_19, %c0_20] : memref<1x16x16x4xbf16, #tpu.memory_space<vmem>>, vector<1x15x15x4xbf16>
    %c0_21 = arith.constant 0 : index
    %c1_22 = arith.constant 1 : index
    %c0_23 = arith.constant 0 : index
    %c8 = arith.constant 8 : index
    %7 = vector.load %arg5[%c0_21, %c1_22, %c0_23, %c8] : memref<1x16x16x36xbf16, #tpu.memory_space<vmem>>, vector<1x15x15x4xbf16>
    tpu.vector_store %arg5[%c0_21, %c1_22, %c0_23, %c8], %6 {strides = array<i32>} : memref<1x16x16x36xbf16, #tpu.memory_space<vmem>>, vector<1x15x15x4xbf16>,
    %c0_24 = arith.constant 0 : index
    %c0_25 = arith.constant 0 : index
    %c0_26 = arith.constant 0 : index
    %c0_27 = arith.constant 0 : index
    %8 = vector.load %arg1[%c0_24, %c0_25, %c0_26, %c0_27] : memref<1x16x16x4xbf16, #tpu.memory_space<vmem>>, vector<1x16x15x4xbf16>
    %c0_28 = arith.constant 0 : index
    %c0_29 = arith.constant 0 : index
    %c1_30 = arith.constant 1 : index
    %c12 = arith.constant 12 : index
    %9 = vector.load %arg5[%c0_28, %c0_29, %c1_30, %c12] : memref<1x16x16x36xbf16, #tpu.memory_space<vmem>>, vector<1x16x15x4xbf16>
    tpu.vector_store %arg5[%c0_28, %c0_29, %c1_30, %c12], %8 {strides = array<i32>} : memref<1x16x16x36xbf16, #tpu.memory_space<vmem>>, vector<1x16x15x4xbf16>,
    %c0_31 = arith.constant 0 : index
    %c0_32 = arith.constant 0 : index
    %c0_33 = arith.constant 0 : index
    %c0_34 = arith.constant 0 : index
    %10 = vector.load %arg1[%c0_31, %c0_32, %c0_33, %c0_34] : memref<1x16x16x4xbf16, #tpu.memory_space<vmem>>, vector<1x16x16x4xbf16>
    %c0_35 = arith.constant 0 : index
    %c0_36 = arith.constant 0 : index
    %c0_37 = arith.constant 0 : index
    %c16 = arith.constant 16 : index
    %11 = vector.load %arg5[%c0_35, %c0_36, %c0_37, %c16] : memref<1x16x16x36xbf16, #tpu.memory_space<vmem>>, vector<1x16x16x4xbf16>
    tpu.vector_store %arg5[%c0_35, %c0_36, %c0_37, %c16], %10 {strides = array<i32>} : memref<1x16x16x36xbf16, #tpu.memory_space<vmem>>, vector<1x16x16x4xbf16>,
    %c0_38 = arith.constant 0 : index
    %c0_39 = arith.constant 0 : index
    %c1_40 = arith.constant 1 : index
    %c0_41 = arith.constant 0 : index
    %12 = vector.load %arg1[%c0_38, %c0_39, %c1_40, %c0_41] : memref<1x16x16x4xbf16, #tpu.memory_space<vmem>>, vector<1x16x15x4xbf16>
    %c0_42 = arith.constant 0 : index
    %c0_43 = arith.constant 0 : index
    %c0_44 = arith.constant 0 : index
    %c20 = arith.constant 20 : index
    %13 = vector.load %arg5[%c0_42, %c0_43, %c0_44, %c20] : memref<1x16x16x36xbf16, #tpu.memory_space<vmem>>, vector<1x16x15x4xbf16>
    tpu.vector_store %arg5[%c0_42, %c0_43, %c0_44, %c20], %12 {strides = array<i32>} : memref<1x16x16x36xbf16, #tpu.memory_space<vmem>>, vector<1x16x15x4xbf16>,
    %c0_45 = arith.constant 0 : index
    %c1_46 = arith.constant 1 : index
    %c0_47 = arith.constant 0 : index
    %c0_48 = arith.constant 0 : index
    %14 = vector.load %arg1[%c0_45, %c1_46, %c0_47, %c0_48] : memref<1x16x16x4xbf16, #tpu.memory_space<vmem>>, vector<1x15x15x4xbf16>
    %c0_49 = arith.constant 0 : index
    %c0_50 = arith.constant 0 : index
    %c1_51 = arith.constant 1 : index
    %c24 = arith.constant 24 : index
    %15 = vector.load %arg5[%c0_49, %c0_50, %c1_51, %c24] : memref<1x16x16x36xbf16, #tpu.memory_space<vmem>>, vector<1x15x15x4xbf16>
    tpu.vector_store %arg5[%c0_49, %c0_50, %c1_51, %c24], %14 {strides = array<i32>} : memref<1x16x16x36xbf16, #tpu.memory_space<vmem>>, vector<1x15x15x4xbf16>,
    %c0_52 = arith.constant 0 : index
    %c1_53 = arith.constant 1 : index
    %c0_54 = arith.constant 0 : index
    %c0_55 = arith.constant 0 : index
    %16 = vector.load %arg1[%c0_52, %c1_53, %c0_54, %c0_55] : memref<1x16x16x4xbf16, #tpu.memory_space<vmem>>, vector<1x15x16x4xbf16>
    %c0_56 = arith.constant 0 : index
    %c0_57 = arith.constant 0 : index
    %c0_58 = arith.constant 0 : index
    %c28 = arith.constant 28 : index
    %17 = vector.load %arg5[%c0_56, %c0_57, %c0_58, %c28] : memref<1x16x16x36xbf16, #tpu.memory_space<vmem>>, vector<1x15x16x4xbf16>
    tpu.vector_store %arg5[%c0_56, %c0_57, %c0_58, %c28], %16 {strides = array<i32>} : memref<1x16x16x36xbf16, #tpu.memory_space<vmem>>, vector<1x15x16x4xbf16>,
    %c0_59 = arith.constant 0 : index
    %c1_60 = arith.constant 1 : index
    %c1_61 = arith.constant 1 : index
    %c0_62 = arith.constant 0 : index
    %18 = vector.load %arg1[%c0_59, %c1_60, %c1_61, %c0_62] : memref<1x16x16x4xbf16, #tpu.memory_space<vmem>>, vector<1x15x15x4xbf16>
    %c0_63 = arith.constant 0 : index
    %c0_64 = arith.constant 0 : index
    %c0_65 = arith.constant 0 : index
    %c32 = arith.constant 32 : index
    %19 = vector.load %arg5[%c0_63, %c0_64, %c0_65, %c32] : memref<1x16x16x36xbf16, #tpu.memory_space<vmem>>, vector<1x15x15x4xbf16>
    tpu.vector_store %arg5[%c0_63, %c0_64, %c0_65, %c32], %18 {strides = array<i32>} : memref<1x16x16x36xbf16, #tpu.memory_space<vmem>>, vector<1x15x15x4xbf16>,
    %c0_66 = arith.constant 0 : index
    %c0_67 = arith.constant 0 : index
    %c0_68 = arith.constant 0 : index
    %c0_69 = arith.constant 0 : index
    %20 = vector.load %arg5[%c0_66, %c0_67, %c0_68, %c0_69] : memref<1x16x16x36xbf16, #tpu.memory_space<vmem>>, vector<1x16x16x36xbf16>
    %21 = vector.shape_cast %20 : vector<1x16x16x36xbf16> to vector<256x36xbf16>
    %c0_70 = arith.constant 0 : index
    %c0_71 = arith.constant 0 : index
    %22 = vector.load %arg2[%c0_70, %c0_71] : memref<36x16xbf16, #tpu.memory_space<vmem>>, vector<36x16xbf16>
    %cst_72 = arith.constant dense<0.000000e+00> : vector<256x16xf32>
    %23 = tpu.matmul %21, %22, %cst_72 {dimension_numbers = #tpu.dot_dimension_numbers<[1], [0], [0], [1], [0, 0, 1, 1], [], []>} : vector<256x36xbf16>, vector<36x16xbf16>, vector<256x16xf32> -> vector<256x16xf32>
    %c0_73 = arith.constant 0 : index
    %c0_74 = arith.constant 0 : index
    %24 = vector.load %arg3[%c0_73, %c0_74] : memref<3x16xf32, #tpu.memory_space<vmem>>, vector<3x16xf32>
    %25 = vector.extract_strided_slice %24 {offsets = [0, 0], sizes = [1, 16], strides = [1, 1]} : vector<3x16xf32> to vector<1x16xf32>
    %26 = vector.broadcast %25 : vector<1x16xf32> to vector<256x16xf32>
    %27 = arith.addf %23, %26 : vector<256x16xf32>
    %cst_75 = arith.constant 0.000000e+00 : f32
    %28 = vector.broadcast %cst_75 : f32 to vector<256x16xf32>
    %29 = arith.cmpf ogt, %27, %28 : vector<256x16xf32>
    %30 = math.exp %27 : vector<256x16xf32>
    %cst_76 = arith.constant 1.000000e+00 : f32
    %31 = vector.broadcast %cst_76 : f32 to vector<256x16xf32>
    %32 = arith.subf %30, %31 : vector<256x16xf32>
    %33 = arith.select %29, %27, %32 : vector<256x16xi1>, vector<256x16xf32>
    %cst_77 = arith.constant dense<0.000000e+00> : vector<16xf32>
    %34 = vector.multi_reduction <add>, %33, %cst_77 [0] : vector<256x16xf32> to vector<16xf32>
    %35 = vector.shape_cast %34 : vector<16xf32> to vector<1x16xf32>
    %cst_78 = arith.constant 3.906250e-03 : f32
    %36 = vector.broadcast %cst_78 : f32 to vector<1x16xf32>
    %37 = arith.mulf %35, %36 : vector<1x16xf32>
    %38 = arith.mulf %33, %33 : vector<256x16xf32>
    %cst_79 = arith.constant dense<0.000000e+00> : vector<16xf32>
    %39 = vector.multi_reduction <add>, %38, %cst_79 [0] : vector<256x16xf32> to vector<16xf32>
    %40 = vector.shape_cast %39 : vector<16xf32> to vector<1x16xf32>
    %cst_80 = arith.constant 3.906250e-03 : f32
    %41 = vector.broadcast %cst_80 : f32 to vector<1x16xf32>
    %42 = arith.mulf %40, %41 : vector<1x16xf32>
    %43 = arith.mulf %37, %37 : vector<1x16xf32>
    %44 = arith.subf %42, %43 : vector<1x16xf32>
    %cst_81 = arith.constant 0.000000e+00 : f32
    %45 = vector.broadcast %cst_81 : f32 to vector<1x16xf32>
    %46 = arith.maximumf %44, %45 : vector<1x16xf32>
    %cst_82 = arith.constant 9.99999974E-6 : f32
    %47 = vector.broadcast %cst_82 : f32 to vector<1x16xf32>
    %48 = arith.addf %46, %47 : vector<1x16xf32>
    %49 = math.rsqrt %48 : vector<1x16xf32>
    %50 = vector.extract_strided_slice %24 {offsets = [1, 0], sizes = [1, 16], strides = [1, 1]} : vector<3x16xf32> to vector<1x16xf32>
    %51 = arith.mulf %49, %50 : vector<1x16xf32>
    %52 = vector.extract_strided_slice %24 {offsets = [2, 0], sizes = [1, 16], strides = [1, 1]} : vector<3x16xf32> to vector<1x16xf32>
    %53 = arith.mulf %37, %51 : vector<1x16xf32>
    %54 = arith.subf %52, %53 : vector<1x16xf32>
    %55 = vector.broadcast %51 : vector<1x16xf32> to vector<256x16xf32>
    %56 = arith.mulf %33, %55 : vector<256x16xf32>
    %57 = vector.broadcast %54 : vector<1x16xf32> to vector<256x16xf32>
    %58 = arith.addf %56, %57 : vector<256x16xf32>
    %59 = tpu.transpose %58, [1, 0] : vector<256x16xf32> -> vector<16x256xf32>
    %c0_83 = arith.constant 0 : index
    %c0_84 = arith.constant 0 : index
    %c0_85 = arith.constant 0 : index
    %60 = vector.load %arg4[%c0_83, %c0_84, %c0_85] : memref<1x16x256xf32, #tpu.memory_space<vmem>>, vector<1x16x256xf32>
    %61 = vector.shape_cast %60 : vector<1x16x256xf32> to vector<16x256xf32>
    %62 = vector.shape_cast %59 : vector<16x256xf32> to vector<1x16x256xf32>
    tpu.vector_store %arg4[%c0_83, %c0_84, %c0_85], %62 {strides = array<i32>} : memref<1x16x256xf32, #tpu.memory_space<vmem>>, vector<1x16x256xf32>,
    return
  }
  func.func @transform_0(%arg0: i32) -> (i32, i32, i32, i32) {
    %c0_i32 = arith.constant 0 : i32
    %c0_i32_0 = arith.constant 0 : i32
    %c0_i32_1 = arith.constant 0 : i32
    %c0_i32_2 = arith.constant 0 : i32
    return %arg0, %c0_i32, %c0_i32_0, %c0_i32_1 : i32, i32, i32, i32
  }
  func.func @transform_1(%arg0: i32) -> (i32, i32) {
    %c0_i32 = arith.constant 0 : i32
    %c0_i32_0 = arith.constant 0 : i32
    %c0_i32_1 = arith.constant 0 : i32
    return %c0_i32, %c0_i32_0 : i32, i32
  }
  func.func @transform_2(%arg0: i32) -> (i32, i32) {
    %c0_i32 = arith.constant 0 : i32
    %c0_i32_0 = arith.constant 0 : i32
    %c0_i32_1 = arith.constant 0 : i32
    return %c0_i32, %c0_i32_0 : i32, i32
  }
  func.func @transform_3(%arg0: i32) -> (i32, i32, i32) {
    %c0_i32 = arith.constant 0 : i32
    %c0_i32_0 = arith.constant 0 : i32
    %c0_i32_1 = arith.constant 0 : i32
    return %arg0, %c0_i32, %c0_i32_0 : i32, i32, i32
  }
}

</mosaic_0001>

<llo_original>
// kernel: tpu_custom_call.1
$region0: #{tpu_custom_call.1}
  #allocation0 [shape = 'u32[]', space=smem, size = 0x4, offset = 0x4, fixed_abs, tag = 'smem constant byte address 0x4 - core index']
  #allocation1 [shape = 'u32[144,128]{1,0:T(1,128)}', space=vmem, size = 0x12000, scoped, tag = 'internal scratch']
  #allocation2 [shape = 'bf16[1,16,16,36]{3,2,1,0:T(16,128)(2,1)}', space=vmem, size = 0x10000, scoped, tag = 'scratch operand']
  %s0 = inlined_call_operand.vmem [shape: bf16[2,16,16,4], index: 0, kind: input, shape index: {}]
  %s1 = inlined_call_operand.vmem [shape: bf16[36,16], index: 1, kind: input, shape index: {}]
  %s2 = inlined_call_operand.vmem [shape: f32[3,16], index: 2, kind: input, shape index: {}]
  %s3 = inlined_call_operand.hbm [shape: f32[2,16,256], index: 3, kind: output, shape index: {}]
  %s4 = sld [smem:[#allocation0]]
  $region45: #{tpu_custom_call.1} parent=0
    _
  %s6 = ssub.s32 1, %s4
  %s7 = scalar_select 0, %s6, %s4
  $region1: #{tpu_custom_call.1} parent=0
    #allocation3 [shape = 'u8[32768]{0}', space=vmem, size = 0x8000, scoped, tag = 'output window, operand 0']
    #allocation4 [shape = 's32[2]{0}', space=sflag, size = 0x8, scoped, tag = 'scoped memory for tpu_custom_call.1']
    %8 = vsyncpa [#allocation4], 0
    %s9 = scalar_lea.sflag [#allocation4], 1
    %10 = vsyncpa %s9, 0
    loop: start=0, step=1, limit=4
    $region2: #{tpu_custom_call.1} parent=1 // loop_pre_header
      _
    $region3: #{tpu_custom_call.1} parent=1 // loop_header
      %s12 = sphi 0, %s16
      %p13 = scmp.ge.s32.totalorder %s12, 4
      %s22 = sphi 0, %s24
      %s25 = sphi 0, %s22
      %s26 = sphi 0, %s25
      %s42 = sphi 0, %s26
      %s46 = sphi 0, %s46
      %s48 = sphi 0, %s46
      %s49 = sphi 0, %s48
      %s63 = sphi 0, %s49
      %s67 = sphi 0, %s67
      %s69 = sphi 0, %s67
      %s70 = sphi 0, %s69
      %s84 = sphi 0, %s70
      %s90 = sphi 0, %s92
      %s93 = sphi 0, %s90
      %s94 = sphi 0, %s93
      %s110 = sphi 0, %s94
    $region4: #{tpu_custom_call.1} parent=1 // loop_header_branch
      %15 = sbr.rel (%p13) target = $region8
    $region5: #{tpu_custom_call.1} parent=1 // loop_body
      %s17 = ssub.s32 %s12, 1
      %s18 = ssub.s32 %s12, 2
      %s19 = sadd.s32 %s12, 1
      %s20 = ssub.s32 %s12, %s19
      %p21 = scmp.eq.s32.totalorder %s20, 0
      %s23 = sadd.s32 %s22, 1
      %s24 = scalar_select %p21, %s22, %s23
      %p27 = pneg %p21
      %p28 = scmp.eq.s32.totalorder %s12, 1
      %p29 = por %p27, %p28
      %p30 = scmp.ne.s32.totalorder %s22, %s25
      %p31 = scmp.eq.s32.totalorder %s12, 0
      %p32 = por %p30, %p31
      %p33 = scmp.ne.s32.totalorder %s22, %s25
      %p34 = scmp.eq.s32.totalorder %s17, 1
      %p35 = por %p33, %p34
      %p36 = scmp.ne.s32.totalorder %s25, %s26
      %p37 = scmp.eq.s32.totalorder %s17, 0
      %p38 = por %p36, %p37
      %p39 = scmp.ne.s32.totalorder %s25, %s26
      %p40 = scmp.eq.s32.totalorder %s18, 1
      %p41 = por %p39, %p40
      %p43 = scmp.ne.s32.totalorder %s26, %s42
      %p44 = scmp.eq.s32.totalorder %s18, 0
      %p45 = por %p43, %p44
      %s47 = sadd.s32 %s46, 1
      %p50 = scmp.eq.s32.totalorder %s12, 1
      %p51 = scmp.ne.s32.totalorder %s46, %s48
      %p52 = scmp.eq.s32.totalorder %s12, 0
      %p53 = por %p51, %p52
      %p54 = scmp.ne.s32.totalorder %s46, %s48
      %p55 = scmp.eq.s32.totalorder %s17, 1
      %p56 = por %p54, %p55
      %p57 = scmp.ne.s32.totalorder %s48, %s49
      %p58 = scmp.eq.s32.totalorder %s17, 0
      %p59 = por %p57, %p58
      %p60 = scmp.ne.s32.totalorder %s48, %s49
      %p61 = scmp.eq.s32.totalorder %s18, 1
      %p62 = por %p60, %p61
      %p64 = scmp.ne.s32.totalorder %s49, %s63
      %p65 = scmp.eq.s32.totalorder %s18, 0
      %p66 = por %p64, %p65
      %s68 = sadd.s32 %s67, 1
      %p71 = scmp.eq.s32.totalorder %s12, 1
      %p72 = scmp.ne.s32.totalorder %s67, %s69
      %p73 = scmp.eq.s32.totalorder %s12, 0
      %p74 = por %p72, %p73
      %p75 = scmp.ne.s32.totalorder %s67, %s69
      %p76 = scmp.eq.s32.totalorder %s17, 1
      %p77 = por %p75, %p76
      %p78 = scmp.ne.s32.totalorder %s69, %s70
      %p79 = scmp.eq.s32.totalorder %s17, 0
      %p80 = por %p78, %p79
      %p81 = scmp.ne.s32.totalorder %s69, %s70
      %p82 = scmp.eq.s32.totalorder %s18, 1
      %p83 = por %p81, %p82
      %p85 = scmp.ne.s32.totalorder %s70, %s84
      %p86 = scmp.eq.s32.totalorder %s18, 0
      %p87 = por %p85, %p86
      %s88 = ssub.s32 %s12, %s19
      %p89 = scmp.eq.s32.totalorder %s88, 0
      %s91 = sadd.s32 %s90, 1
      %s92 = scalar_select %p89, %s90, %s91
      %p95 = pneg %p89
      %p96 = scmp.eq.s32.totalorder %s12, 1
      %p97 = por %p95, %p96
      %p98 = scmp.ne.s32.totalorder %s90, %s93
      %p99 = scmp.eq.s32.totalorder %s12, 0
      %p100 = por %p98, %p99
      %p101 = scmp.ne.s32.totalorder %s90, %s93
      %p102 = scmp.eq.s32.totalorder %s17, 1
      %p103 = por %p101, %p102
      %p104 = scmp.ne.s32.totalorder %s93, %s94
      %p105 = scmp.eq.s32.totalorder %s17, 0
      %p106 = por %p104, %p105
      %p107 = scmp.ne.s32.totalorder %s93, %s94
      %p108 = scmp.eq.s32.totalorder %s18, 1
      %p109 = por %p107, %p108
      %p111 = scmp.ne.s32.totalorder %s94, %s110
      %p112 = scmp.eq.s32.totalorder %s18, 0
      %p113 = por %p111, %p112
      %p114 = scmp.le.s32.totalorder 1, %s12
      %p115 = scmp.lt.s32.totalorder %s12, 3
      %p116 = pnand %p114, %p115
      %p117 = pneg %p116
      // Predicated region
      $region9: #{tpu_custom_call.1} parent=5 // pred_check
        _
      $region10: #{tpu_custom_call.1} parent=5 // pred_check_branch
        %119 = sbr.rel (%p116) target = $region12
      $region11: #{tpu_custom_call.1} parent=5 // pred_region
        %s120 = ssub.s32 %s12, 1
        // Predicated region
        $region13: #{tpu_custom_call.1} parent=11 // pred_check
          %p121 = pneg %p59
        $region14: #{tpu_custom_call.1} parent=11 // pred_check_branch
          %123 = sbr.rel (%p121) target = $region16
        $region15: #{tpu_custom_call.1} parent=11 // pred_region
          _
        $region16: #{tpu_custom_call.1} parent=11 // pred_fallthru
          _
        // Predicated region
        $region17: #{tpu_custom_call.1} parent=11 // pred_check
          %p124 = pneg %p80
        $region18: #{tpu_custom_call.1} parent=11 // pred_check_branch
          %126 = sbr.rel (%p124) target = $region20
        $region19: #{tpu_custom_call.1} parent=11 // pred_region
          _
        $region20: #{tpu_custom_call.1} parent=11 // pred_fallthru
          _
      $region12: #{tpu_custom_call.1} parent=5 // pred_fallthru
        _
      %p127 = scmp.lt.s32.totalorder %s12, 2
      // Predicated region
      $region21: #{tpu_custom_call.1} parent=5 // pred_check
        %p128 = pneg %p127
      $region22: #{tpu_custom_call.1} parent=5 // pred_check_branch
        %130 = sbr.rel (%p128) target = $region24
      $region23: #{tpu_custom_call.1} parent=5 // pred_region
        // Predicated region
        $region25: #{tpu_custom_call.1} parent=23 // pred_check
          %p131 = pneg %p32
        $region26: #{tpu_custom_call.1} parent=23 // pred_check_branch
          %133 = sbr.rel (%p131) target = $region28
        $region27: #{tpu_custom_call.1} parent=23 // pred_region
          %p134 = scmp.lt.s32.totalorder %s12, 1
          %s135 = scalar_select %p134, %s12, 1
          %s136 = smul.addr %s135, 32
          %s137 = smul.addr %s136, 4
          %s138 = scalar_lea.vmem %s0, %s137
        $region28: #{tpu_custom_call.1} parent=23 // pred_fallthru
          _
      $region24: #{tpu_custom_call.1} parent=5 // pred_fallthru
        _
      %p139 = scmp.le.s32.totalorder 1, %s12
      %p140 = scmp.lt.s32.totalorder %s12, 3
      %p141 = pnand %p139, %p140
      %p142 = pneg %p141
      // Predicated region
      $region29: #{tpu_custom_call.1} parent=5 // pred_check
        _
      $region30: #{tpu_custom_call.1} parent=5 // pred_check_branch
        %144 = sbr.rel (%p141) target = $region32
      $region31: #{tpu_custom_call.1} parent=5 // pred_region
        %s145 = ssub.s32 %s12, 1
        %p146 = scmp.lt.s32.totalorder %s17, 1
        %s147 = scalar_select %p146, %s17, 1
        %s148 = smul.addr %s147, 32
        %s149 = smul.addr %s148, 4
        %s150 = scalar_lea.vmem %s0, %s149
        %p151 = pneg %p38
        %p152 = pneg %p35
        %p153 = pneg %p59
        %p154 = pneg %p56
        %p155 = pneg %p80
        %p156 = pneg %p77
        %p157 = pneg %p106
        %p158 = pneg %p103
        %s159 = sand.u32 %s93, 1
        %s160 = scalar_lea.sflag [#allocation4], %s159
        %s161 = sand.u32 %s93, 1
        %s162 = smul.addr %s161, 32
        %s163 = scalar_lea.vmem [#allocation3], %s162
        %p164 = scmp.lt.s32.totalorder %s17, 1
        %s165 = scalar_select %p164, %s17, 1
        %s166 = smul.addr %s165, 32
        %s167 = smul.addr %s166, 4
        %s168 = scalar_lea.vmem %s0, %s167
        %vm170 = vcmask 293888
        %171 = vst.msk [vmem:[#allocation2] sm:$0xff] %vm170, 0
        %172 = vst.msk [vmem:[#allocation2 + $0x8] sm:$0xff] %vm170, 0
        %173 = vst.msk [vmem:[#allocation2 + $0x10] sm:$0xff] %vm170, 0
        %174 = vst.msk [vmem:[#allocation2 + $0x18] sm:$0xff] %vm170, 0
        %175 = vst.msk [vmem:[#allocation2 + $0x20] sm:$0xff] %vm170, 0
        %176 = vst.msk [vmem:[#allocation2 + $0x28] sm:$0xff] %vm170, 0
        %177 = vst.msk [vmem:[#allocation2 + $0x30] sm:$0xff] %vm170, 0
        %178 = vst.msk [vmem:[#allocation2 + $0x38] sm:$0xff] %vm170, 0
        %179 = vst.msk [vmem:[#allocation2 + $0x40] sm:$0xff] %vm170, 0
        %180 = vst.msk [vmem:[#allocation2 + $0x48] sm:$0xff] %vm170, 0
        %181 = vst.msk [vmem:[#allocation2 + $0x50] sm:$0xff] %vm170, 0
        %182 = vst.msk [vmem:[#allocation2 + $0x58] sm:$0xff] %vm170, 0
        %183 = vst.msk [vmem:[#allocation2 + $0x60] sm:$0xff] %vm170, 0
        %184 = vst.msk [vmem:[#allocation2 + $0x68] sm:$0xff] %vm170, 0
        %185 = vst.msk [vmem:[#allocation2 + $0x70] sm:$0xff] %vm170, 0
        %186 = vst.msk [vmem:[#allocation2 + $0x78] sm:$0xff] %vm170, 0
        %v187 = vld [vmem:[%s168] sm:$0xf]
        %v188 = vld [vmem:[%s168 + $0x4] sm:$0xf]
        %v189 = vld [vmem:[%s168 + $0x8] sm:$0xf]
        %v190 = vld [vmem:[%s168 + $0xc] sm:$0xf]
        %v191 = vld [vmem:[%s168 + $0x10] sm:$0xf]
        %v192 = vld [vmem:[%s168 + $0x14] sm:$0xf]
        %v193 = vld [vmem:[%s168 + $0x18] sm:$0xf]
        %v194 = vld [vmem:[%s168 + $0x1c] sm:$0xf]
        %v195 = vld [vmem:[%s168 + $0x20] sm:$0xf]
        %v196 = vld [vmem:[%s168 + $0x24] sm:$0xf]
        %v197 = vld [vmem:[%s168 + $0x28] sm:$0xf]
        %v198 = vld [vmem:[%s168 + $0x2c] sm:$0xf]
        %v199 = vld [vmem:[%s168 + $0x30] sm:$0xf]
        %v200 = vld [vmem:[%s168 + $0x34] sm:$0xf]
        %v201 = vld [vmem:[%s168 + $0x38] sm:$0xf]
        %v202 = vld [vmem:[%s168 + $0x3c] sm:$0xf]
        %v203 = vld [vmem:[%s168 + $0x40] sm:$0xf]
        %v204 = vld [vmem:[%s168 + $0x44] sm:$0xf]
        %v205 = vld [vmem:[%s168 + $0x48] sm:$0xf]
        %v206 = vld [vmem:[%s168 + $0x4c] sm:$0xf]
        %v207 = vld [vmem:[%s168 + $0x50] sm:$0xf]
        %v208 = vld [vmem:[%s168 + $0x54] sm:$0xf]
        %v209 = vld [vmem:[%s168 + $0x58] sm:$0xf]
        %v210 = vld [vmem:[%s168 + $0x5c] sm:$0xf]
        %v211 = vld [vmem:[%s168 + $0x60] sm:$0xf]
        %v212 = vld [vmem:[%s168 + $0x64] sm:$0xf]
        %v213 = vld [vmem:[%s168 + $0x68] sm:$0xf]
        %v214 = vld [vmem:[%s168 + $0x6c] sm:$0xf]
        %v215 = vld [vmem:[%s168 + $0x70] sm:$0xf]
        %v216 = vld [vmem:[%s168 + $0x74] sm:$0xf]
        %v247 = vunpack.c.l.b16 %v187
        %v248 = vunpack.c.l.b16 %v188
        %v249 = vunpack.c.l.b16 %v189
        %v250 = vunpack.c.l.b16 %v190
        %v251 = vunpack.c.l.b16 %v191
        %v252 = vunpack.c.l.b16 %v192
        %v253 = vunpack.c.l.b16 %v193
        %v254 = vunpack.c.l.b16 %v194
        %v255 = vunpack.c.l.b16 %v195
        %v256 = vunpack.c.l.b16 %v196
        %v257 = vunpack.c.l.b16 %v197
        %v258 = vunpack.c.l.b16 %v198
        %v259 = vunpack.c.l.b16 %v199
        %v260 = vunpack.c.l.b16 %v200
        %v261 = vunpack.c.l.b16 %v201
        %v262 = vunpack.c.l.b16 %v202
        %v263 = vunpack.c.l.b16 %v203
        %v264 = vunpack.c.l.b16 %v204
        %v265 = vunpack.c.l.b16 %v205
        %v266 = vunpack.c.l.b16 %v206
        %v267 = vunpack.c.l.b16 %v207
        %v268 = vunpack.c.l.b16 %v208
        %v269 = vunpack.c.l.b16 %v209
        %v270 = vunpack.c.l.b16 %v210
        %v271 = vunpack.c.l.b16 %v211
        %v272 = vunpack.c.l.b16 %v212
        %v273 = vunpack.c.l.b16 %v213
        %v274 = vunpack.c.l.b16 %v214
        %v275 = vunpack.c.l.b16 %v215
        %v276 = vunpack.c.l.b16 %v216
        %v277 = vpack.c.b16 %v248, %v247
        %v278 = vpack.c.b16 %v250, %v249
        %v279 = vpack.c.b16 %v252, %v251
        %v280 = vpack.c.b16 %v254, %v253
        %v281 = vpack.c.b16 %v256, %v255
        %v282 = vpack.c.b16 %v258, %v257
        %v283 = vpack.c.b16 %v260, %v259
        %v284 = vpack.c.b16 %v262, %v261
        %v285 = vpack.c.b16 %v264, %v263
        %v286 = vpack.c.b16 %v266, %v265
        %v287 = vpack.c.b16 %v268, %v267
        %v288 = vpack.c.b16 %v270, %v269
        %v289 = vpack.c.b16 %v272, %v271
        %v290 = vpack.c.b16 %v274, %v273
        %v291 = vpack.c.b16 %v276, %v275
        %v293 = vshrl.u32 %v277, 16
        %v295 = vrot.slane %v293, 7
        %v296 = vshll.u32 %v277, 16
        %v298 = vor.u32 %v295, %v296
        %v300 = vshrl.u32 %v278, 16
        %v302 = vrot.slane %v300, 7
        %v303 = vshll.u32 %v278, 16
        %v305 = vor.u32 %v302, %v303
        %v307 = vshrl.u32 %v279, 16
        %v309 = vrot.slane %v307, 7
        %v310 = vshll.u32 %v279, 16
        %v312 = vor.u32 %v309, %v310
        %v314 = vshrl.u32 %v280, 16
        %v316 = vrot.slane %v314, 7
        %v317 = vshll.u32 %v280, 16
        %v319 = vor.u32 %v316, %v317
        %v321 = vshrl.u32 %v281, 16
        %v323 = vrot.slane %v321, 7
        %v324 = vshll.u32 %v281, 16
        %v326 = vor.u32 %v323, %v324
        %v328 = vshrl.u32 %v282, 16
        %v330 = vrot.slane %v328, 7
        %v331 = vshll.u32 %v282, 16
        %v333 = vor.u32 %v330, %v331
        %v335 = vshrl.u32 %v283, 16
        %v337 = vrot.slane %v335, 7
        %v338 = vshll.u32 %v283, 16
        %v340 = vor.u32 %v337, %v338
        %v342 = vshrl.u32 %v284, 16
        %v344 = vrot.slane %v342, 7
        %v345 = vshll.u32 %v284, 16
        %v347 = vor.u32 %v344, %v345
        %v349 = vshrl.u32 %v285, 16
        %v351 = vrot.slane %v349, 7
        %v352 = vshll.u32 %v285, 16
        %v354 = vor.u32 %v351, %v352
        %v356 = vshrl.u32 %v286, 16
        %v358 = vrot.slane %v356, 7
        %v359 = vshll.u32 %v286, 16
        %v361 = vor.u32 %v358, %v359
        %v363 = vshrl.u32 %v287, 16
        %v365 = vrot.slane %v363, 7
        %v366 = vshll.u32 %v287, 16
        %v368 = vor.u32 %v365, %v366
        %v370 = vshrl.u32 %v288, 16
        %v372 = vrot.slane %v370, 7
        %v373 = vshll.u32 %v288, 16
        %v375 = vor.u32 %v372, %v373
        %v377 = vshrl.u32 %v289, 16
        %v379 = vrot.slane %v377, 7
        %v380 = vshll.u32 %v289, 16
        %v382 = vor.u32 %v379, %v380
        %v384 = vshrl.u32 %v290, 16
        %v386 = vrot.slane %v384, 7
        %v387 = vshll.u32 %v290, 16
        %v389 = vor.u32 %v386, %v387
        %v391 = vshrl.u32 %v291, 16
        %v393 = vrot.slane %v391, 7
        %v394 = vshll.u32 %v291, 16
        %v396 = vor.u32 %v393, %v394
        %s412 = scalar_lea.vmem [#allocation2], 8
        %vm413 = vcmask 31744
        %vm414 = vsmask.f32 7938
        %vm415 = vmand %vm413, %vm414
        %v416 = vld [vmem:[%s412] sm:$0xff]
        %v417 = vsel %vm415, %v298, %v416
        %418 = vst [vmem:[%s412] sm:$0xff] %v417
        %v419 = vld [vmem:[%s412 + $0x8] sm:$0xff]
        %v420 = vsel %vm415, %v305, %v419
        %421 = vst [vmem:[%s412 + $0x8] sm:$0xff] %v420
        %v422 = vld [vmem:[%s412 + $0x10] sm:$0xff]
        %v423 = vsel %vm415, %v312, %v422
        %424 = vst [vmem:[%s412 + $0x10] sm:$0xff] %v423
        %v425 = vld [vmem:[%s412 + $0x18] sm:$0xff]
        %v426 = vsel %vm415, %v319, %v425
        %427 = vst [vmem:[%s412 + $0x18] sm:$0xff] %v426
        %v428 = vld [vmem:[%s412 + $0x20] sm:$0xff]
        %v429 = vsel %vm415, %v326, %v428
        %430 = vst [vmem:[%s412 + $0x20] sm:$0xff] %v429
        %v431 = vld [vmem:[%s412 + $0x28] sm:$0xff]
        %v432 = vsel %vm415, %v333, %v431
        %433 = vst [vmem:[%s412 + $0x28] sm:$0xff] %v432
        %v434 = vld [vmem:[%s412 + $0x30] sm:$0xff]
        %v435 = vsel %vm415, %v340, %v434
        %436 = vst [vmem:[%s412 + $0x30] sm:$0xff] %v435
        %v437 = vld [vmem:[%s412 + $0x38] sm:$0xff]
        %v438 = vsel %vm415, %v347, %v437
        %439 = vst [vmem:[%s412 + $0x38] sm:$0xff] %v438
        %v440 = vld [vmem:[%s412 + $0x40] sm:$0xff]
        %v441 = vsel %vm415, %v354, %v440
        %442 = vst [vmem:[%s412 + $0x40] sm:$0xff] %v441
        %v443 = vld [vmem:[%s412 + $0x48] sm:$0xff]
        %v444 = vsel %vm415, %v361, %v443
        %445 = vst [vmem:[%s412 + $0x48] sm:$0xff] %v444
        %v446 = vld [vmem:[%s412 + $0x50] sm:$0xff]
        %v447 = vsel %vm415, %v368, %v446
        %448 = vst [vmem:[%s412 + $0x50] sm:$0xff] %v447
        %v449 = vld [vmem:[%s412 + $0x58] sm:$0xff]
        %v450 = vsel %vm415, %v375, %v449
        %451 = vst [vmem:[%s412 + $0x58] sm:$0xff] %v450
        %v452 = vld [vmem:[%s412 + $0x60] sm:$0xff]
        %v453 = vsel %vm415, %v382, %v452
        %454 = vst [vmem:[%s412 + $0x60] sm:$0xff] %v453
        %v455 = vld [vmem:[%s412 + $0x68] sm:$0xff]
        %v456 = vsel %vm415, %v389, %v455
        %457 = vst [vmem:[%s412 + $0x68] sm:$0xff] %v456
        %v458 = vld [vmem:[%s412 + $0x70] sm:$0xff]
        %v459 = vsel %vm415, %v396, %v458
        %460 = vst [vmem:[%s412 + $0x70] sm:$0xff] %v459
        %v461 = vld [vmem:[%s168] sm:$0xf]
        %v462 = vld [vmem:[%s168 + $0x4] sm:$0xf]
        %v463 = vld [vmem:[%s168 + $0x8] sm:$0xf]
        %v464 = vld [vmem:[%s168 + $0xc] sm:$0xf]
        %v465 = vld [vmem:[%s168 + $0x10] sm:$0xf]
        %v466 = vld [vmem:[%s168 + $0x14] sm:$0xf]
        %v467 = vld [vmem:[%s168 + $0x18] sm:$0xf]
        %v468 = vld [vmem:[%s168 + $0x1c] sm:$0xf]
        %v469 = vld [vmem:[%s168 + $0x20] sm:$0xf]
        %v470 = vld [vmem:[%s168 + $0x24] sm:$0xf]
        %v471 = vld [vmem:[%s168 + $0x28] sm:$0xf]
        %v472 = vld [vmem:[%s168 + $0x2c] sm:$0xf]
        %v473 = vld [vmem:[%s168 + $0x30] sm:$0xf]
        %v474 = vld [vmem:[%s168 + $0x34] sm:$0xf]
        %v475 = vld [vmem:[%s168 + $0x38] sm:$0xf]
        %v476 = vld [vmem:[%s168 + $0x3c] sm:$0xf]
        %v477 = vld [vmem:[%s168 + $0x40] sm:$0xf]
        %v478 = vld [vmem:[%s168 + $0x44] sm:$0xf]
        %v479 = vld [vmem:[%s168 + $0x48] sm:$0xf]
        %v480 = vld [vmem:[%s168 + $0x4c] sm:$0xf]
        %v481 = vld [vmem:[%s168 + $0x50] sm:$0xf]
        %v482 = vld [vmem:[%s168 + $0x54] sm:$0xf]
        %v483 = vld [vmem:[%s168 + $0x58] sm:$0xf]
        %v484 = vld [vmem:[%s168 + $0x5c] sm:$0xf]
        %v485 = vld [vmem:[%s168 + $0x60] sm:$0xf]
        %v486 = vld [vmem:[%s168 + $0x64] sm:$0xf]
        %v487 = vld [vmem:[%s168 + $0x68] sm:$0xf]
        %v488 = vld [vmem:[%s168 + $0x6c] sm:$0xf]
        %v489 = vld [vmem:[%s168 + $0x70] sm:$0xf]
        %v490 = vld [vmem:[%s168 + $0x74] sm:$0xf]
        %v521 = vunpack.c.l.b16 %v461
        %v522 = vunpack.c.l.b16 %v462
        %v523 = vunpack.c.l.b16 %v463
        %v524 = vunpack.c.l.b16 %v464
        %v525 = vunpack.c.l.b16 %v465
        %v526 = vunpack.c.l.b16 %v466
        %v527 = vunpack.c.l.b16 %v467
        %v528 = vunpack.c.l.b16 %v468
        %v529 = vunpack.c.l.b16 %v469
        %v530 = vunpack.c.l.b16 %v470
        %v531 = vunpack.c.l.b16 %v471
        %v532 = vunpack.c.l.b16 %v472
        %v533 = vunpack.c.l.b16 %v473
        %v534 = vunpack.c.l.b16 %v474
        %v535 = vunpack.c.l.b16 %v475
        %v536 = vunpack.c.l.b16 %v476
        %v537 = vunpack.c.l.b16 %v477
        %v538 = vunpack.c.l.b16 %v478
        %v539 = vunpack.c.l.b16 %v479
        %v540 = vunpack.c.l.b16 %v480
        %v541 = vunpack.c.l.b16 %v481
        %v542 = vunpack.c.l.b16 %v482
        %v543 = vunpack.c.l.b16 %v483
        %v544 = vunpack.c.l.b16 %v484
        %v545 = vunpack.c.l.b16 %v485
        %v546 = vunpack.c.l.b16 %v486
        %v547 = vunpack.c.l.b16 %v487
        %v548 = vunpack.c.l.b16 %v488
        %v549 = vunpack.c.l.b16 %v489
        %v550 = vunpack.c.l.b16 %v490
        %v551 = vpack.c.b16 %v522, %v521
        %v552 = vpack.c.b16 %v524, %v523
        %v553 = vpack.c.b16 %v526, %v525
        %v554 = vpack.c.b16 %v528, %v527
        %v555 = vpack.c.b16 %v530, %v529
        %v556 = vpack.c.b16 %v532, %v531
        %v557 = vpack.c.b16 %v534, %v533
        %v558 = vpack.c.b16 %v536, %v535
        %v559 = vpack.c.b16 %v538, %v537
        %v560 = vpack.c.b16 %v540, %v539
        %v561 = vpack.c.b16 %v542, %v541
        %v562 = vpack.c.b16 %v544, %v543
        %v563 = vpack.c.b16 %v546, %v545
        %v564 = vpack.c.b16 %v548, %v547
        %v565 = vpack.c.b16 %v550, %v549
        %566 = vrot.lane.b32.xlu0 %v551, 4
        %v567 = vpop.permute.xlu0 %566
        %568 = vrot.lane.b32.xlu0 %v552, 4
        %v569 = vpop.permute.xlu0 %568
        %570 = vrot.lane.b32.xlu0 %v553, 4
        %v571 = vpop.permute.xlu0 %570
        %572 = vrot.lane.b32.xlu0 %v554, 4
        %v573 = vpop.permute.xlu0 %572
        %574 = vrot.lane.b32.xlu0 %v555, 4
        %v575 = vpop.permute.xlu0 %574
        %576 = vrot.lane.b32.xlu0 %v556, 4
        %v577 = vpop.permute.xlu0 %576
        %578 = vrot.lane.b32.xlu0 %v557, 4
        %v579 = vpop.permute.xlu0 %578
        %580 = vrot.lane.b32.xlu0 %v558, 4
        %v581 = vpop.permute.xlu0 %580
        %582 = vrot.lane.b32.xlu0 %v559, 4
        %v583 = vpop.permute.xlu0 %582
        %584 = vrot.lane.b32.xlu0 %v560, 4
        %v585 = vpop.permute.xlu0 %584
        %586 = vrot.lane.b32.xlu0 %v561, 4
        %v587 = vpop.permute.xlu0 %586
        %588 = vrot.lane.b32.xlu0 %v562, 4
        %v589 = vpop.permute.xlu0 %588
        %590 = vrot.lane.b32.xlu0 %v563, 4
        %v591 = vpop.permute.xlu0 %590
        %592 = vrot.lane.b32.xlu0 %v564, 4
        %v593 = vpop.permute.xlu0 %592
        %594 = vrot.lane.b32.xlu0 %v565, 4
        %v595 = vpop.permute.xlu0 %594
        %vm611 = vcmask 64544
        %612 = vst.msk [vmem:[%s412] sm:$0xff] %vm611, %v567
        %613 = vst.msk [vmem:[%s412 + $0x8] sm:$0xff] %vm611, %v569
        %614 = vst.msk [vmem:[%s412 + $0x10] sm:$0xff] %vm611, %v571
        %615 = vst.msk [vmem:[%s412 + $0x18] sm:$0xff] %vm611, %v573
        %616 = vst.msk [vmem:[%s412 + $0x20] sm:$0xff] %vm611, %v575
        %617 = vst.msk [vmem:[%s412 + $0x28] sm:$0xff] %vm611, %v577
        %618 = vst.msk [vmem:[%s412 + $0x30] sm:$0xff] %vm611, %v579
        %619 = vst.msk [vmem:[%s412 + $0x38] sm:$0xff] %vm611, %v581
        %620 = vst.msk [vmem:[%s412 + $0x40] sm:$0xff] %vm611, %v583
        %621 = vst.msk [vmem:[%s412 + $0x48] sm:$0xff] %vm611, %v585
        %622 = vst.msk [vmem:[%s412 + $0x50] sm:$0xff] %vm611, %v587
        %623 = vst.msk [vmem:[%s412 + $0x58] sm:$0xff] %vm611, %v589
        %624 = vst.msk [vmem:[%s412 + $0x60] sm:$0xff] %vm611, %v591
        %625 = vst.msk [vmem:[%s412 + $0x68] sm:$0xff] %vm611, %v593
        %626 = vst.msk [vmem:[%s412 + $0x70] sm:$0xff] %vm611, %v595
        %v627 = vld [vmem:[%s168] sm:$0xf]
        %v628 = vld [vmem:[%s168 + $0x4] sm:$0xf]
        %v629 = vld [vmem:[%s168 + $0x8] sm:$0xf]
        %v630 = vld [vmem:[%s168 + $0xc] sm:$0xf]
        %v631 = vld [vmem:[%s168 + $0x10] sm:$0xf]
        %v632 = vld [vmem:[%s168 + $0x14] sm:$0xf]
        %v633 = vld [vmem:[%s168 + $0x18] sm:$0xf]
        %v634 = vld [vmem:[%s168 + $0x1c] sm:$0xf]
        %v635 = vld [vmem:[%s168 + $0x20] sm:$0xf]
        %v636 = vld [vmem:[%s168 + $0x24] sm:$0xf]
        %v637 = vld [vmem:[%s168 + $0x28] sm:$0xf]
        %v638 = vld [vmem:[%s168 + $0x2c] sm:$0xf]
        %v639 = vld [vmem:[%s168 + $0x30] sm:$0xf]
        %v640 = vld [vmem:[%s168 + $0x34] sm:$0xf]
        %v641 = vld [vmem:[%s168 + $0x38] sm:$0xf]
        %v642 = vld [vmem:[%s168 + $0x3c] sm:$0xf]
        %v643 = vld [vmem:[%s168 + $0x40] sm:$0xf]
        %v644 = vld [vmem:[%s168 + $0x44] sm:$0xf]
        %v645 = vld [vmem:[%s168 + $0x48] sm:$0xf]
        %v646 = vld [vmem:[%s168 + $0x4c] sm:$0xf]
        %v647 = vld [vmem:[%s168 + $0x50] sm:$0xf]
        %v648 = vld [vmem:[%s168 + $0x54] sm:$0xf]
        %v649 = vld [vmem:[%s168 + $0x58] sm:$0xf]
        %v650 = vld [vmem:[%s168 + $0x5c] sm:$0xf]
        %v651 = vld [vmem:[%s168 + $0x60] sm:$0xf]
        %v652 = vld [vmem:[%s168 + $0x64] sm:$0xf]
        %v653 = vld [vmem:[%s168 + $0x68] sm:$0xf]
        %v654 = vld [vmem:[%s168 + $0x6c] sm:$0xf]
        %v655 = vld [vmem:[%s168 + $0x70] sm:$0xf]
        %v656 = vld [vmem:[%s168 + $0x74] sm:$0xf]
        %v687 = vunpack.c.l.b16 %v627
        %v688 = vunpack.c.l.b16 %v628
        %v689 = vunpack.c.l.b16 %v629
        %v690 = vunpack.c.l.b16 %v630
        %v691 = vunpack.c.l.b16 %v631
        %v692 = vunpack.c.l.b16 %v632
        %v693 = vunpack.c.l.b16 %v633
        %v694 = vunpack.c.l.b16 %v634
        %v695 = vunpack.c.l.b16 %v635
        %v696 = vunpack.c.l.b16 %v636
        %v697 = vunpack.c.l.b16 %v637
        %v698 = vunpack.c.l.b16 %v638
        %v699 = vunpack.c.l.b16 %v639
        %v700 = vunpack.c.l.b16 %v640
        %v701 = vunpack.c.l.b16 %v641
        %v702 = vunpack.c.l.b16 %v642
        %v703 = vunpack.c.l.b16 %v643
        %v704 = vunpack.c.l.b16 %v644
        %v705 = vunpack.c.l.b16 %v645
        %v706 = vunpack.c.l.b16 %v646
        %v707 = vunpack.c.l.b16 %v647
        %v708 = vunpack.c.l.b16 %v648
        %v709 = vunpack.c.l.b16 %v649
        %v710 = vunpack.c.l.b16 %v650
        %v711 = vunpack.c.l.b16 %v651
        %v712 = vunpack.c.l.b16 %v652
        %v713 = vunpack.c.l.b16 %v653
        %v714 = vunpack.c.l.b16 %v654
        %v715 = vunpack.c.l.b16 %v655
        %v716 = vunpack.c.l.b16 %v656
        %v717 = vpack.c.b16 %v688, %v687
        %v718 = vpack.c.b16 %v690, %v689
        %v719 = vpack.c.b16 %v692, %v691
        %v720 = vpack.c.b16 %v694, %v693
        %v721 = vpack.c.b16 %v696, %v695
        %v722 = vpack.c.b16 %v698, %v697
        %v723 = vpack.c.b16 %v700, %v699
        %v724 = vpack.c.b16 %v702, %v701
        %v725 = vpack.c.b16 %v704, %v703
        %v726 = vpack.c.b16 %v706, %v705
        %v727 = vpack.c.b16 %v708, %v707
        %v728 = vpack.c.b16 %v710, %v709
        %v729 = vpack.c.b16 %v712, %v711
        %v730 = vpack.c.b16 %v714, %v713
        %v731 = vpack.c.b16 %v716, %v715
        %v733 = vshrl.u32 %v717, 16
        %v735 = vshll.u32 %v717, 16
        %v737 = vrot.slane %v735, 1
        %v738 = vor.u32 %v733, %v737
        %v740 = vshrl.u32 %v718, 16
        %v742 = vshll.u32 %v718, 16
        %v744 = vrot.slane %v742, 1
        %v745 = vor.u32 %v740, %v744
        %v747 = vshrl.u32 %v719, 16
        %v749 = vshll.u32 %v719, 16
        %v751 = vrot.slane %v749, 1
        %v752 = vor.u32 %v747, %v751
        %v754 = vshrl.u32 %v720, 16
        %v756 = vshll.u32 %v720, 16
        %v758 = vrot.slane %v756, 1
        %v759 = vor.u32 %v754, %v758
        %v761 = vshrl.u32 %v721, 16
        %v763 = vshll.u32 %v721, 16
        %v765 = vrot.slane %v763, 1
        %v766 = vor.u32 %v761, %v765
        %v768 = vshrl.u32 %v722, 16
        %v770 = vshll.u32 %v722, 16
        %v772 = vrot.slane %v770, 1
        %v773 = vor.u32 %v768, %v772
        %v775 = vshrl.u32 %v723, 16
        %v777 = vshll.u32 %v723, 16
        %v779 = vrot.slane %v777, 1
        %v780 = vor.u32 %v775, %v779
        %v782 = vshrl.u32 %v724, 16
        %v784 = vshll.u32 %v724, 16
        %v786 = vrot.slane %v784, 1
        %v787 = vor.u32 %v782, %v786
        %v789 = vshrl.u32 %v725, 16
        %v791 = vshll.u32 %v725, 16
        %v793 = vrot.slane %v791, 1
        %v794 = vor.u32 %v789, %v793
        %v796 = vshrl.u32 %v726, 16
        %v798 = vshll.u32 %v726, 16
        %v800 = vrot.slane %v798, 1
        %v801 = vor.u32 %v796, %v800
        %v803 = vshrl.u32 %v727, 16
        %v805 = vshll.u32 %v727, 16
        %v807 = vrot.slane %v805, 1
        %v808 = vor.u32 %v803, %v807
        %v810 = vshrl.u32 %v728, 16
        %v812 = vshll.u32 %v728, 16
        %v814 = vrot.slane %v812, 1
        %v815 = vor.u32 %v810, %v814
        %v817 = vshrl.u32 %v729, 16
        %v819 = vshll.u32 %v729, 16
        %v821 = vrot.slane %v819, 1
        %v822 = vor.u32 %v817, %v821
        %v824 = vshrl.u32 %v730, 16
        %v826 = vshll.u32 %v730, 16
        %v828 = vrot.slane %v826, 1
        %v829 = vor.u32 %v824, %v828
        %v831 = vshrl.u32 %v731, 16
        %v833 = vshll.u32 %v731, 16
        %v835 = vrot.slane %v833, 1
        %v836 = vor.u32 %v831, %v835
        %837 = vrot.lane.b32.xlu0 %v738, 8
        %v838 = vpop.permute.xlu0 %837
        %839 = vrot.lane.b32.xlu0 %v745, 8
        %v840 = vpop.permute.xlu0 %839
        %841 = vrot.lane.b32.xlu0 %v752, 8
        %v842 = vpop.permute.xlu0 %841
        %843 = vrot.lane.b32.xlu0 %v759, 8
        %v844 = vpop.permute.xlu0 %843
        %845 = vrot.lane.b32.xlu0 %v766, 8
        %v846 = vpop.permute.xlu0 %845
        %847 = vrot.lane.b32.xlu0 %v773, 8
        %v848 = vpop.permute.xlu0 %847
        %849 = vrot.lane.b32.xlu0 %v780, 8
        %v850 = vpop.permute.xlu0 %849
        %851 = vrot.lane.b32.xlu0 %v787, 8
        %v852 = vpop.permute.xlu0 %851
        %853 = vrot.lane.b32.xlu0 %v794, 8
        %v854 = vpop.permute.xlu0 %853
        %855 = vrot.lane.b32.xlu0 %v801, 8
        %v856 = vpop.permute.xlu0 %855
        %857 = vrot.lane.b32.xlu0 %v808, 8
        %v858 = vpop.permute.xlu0 %857
        %859 = vrot.lane.b32.xlu0 %v815, 8
        %v860 = vpop.permute.xlu0 %859
        %861 = vrot.lane.b32.xlu0 %v822, 8
        %v862 = vpop.permute.xlu0 %861
        %863 = vrot.lane.b32.xlu0 %v829, 8
        %v864 = vpop.permute.xlu0 %863
        %865 = vrot.lane.b32.xlu0 %v836, 8
        %v866 = vpop.permute.xlu0 %865
        %vm882 = vcmask 97344
        %vm883 = vsmask.f32 7424
        %vm884 = vmand %vm882, %vm883
        %v885 = vld [vmem:[%s412] sm:$0xff]
        %v886 = vsel %vm884, %v838, %v885
        %887 = vst [vmem:[%s412] sm:$0xff] %v886
        %v888 = vld [vmem:[%s412 + $0x8] sm:$0xff]
        %v889 = vsel %vm884, %v840, %v888
        %890 = vst [vmem:[%s412 + $0x8] sm:$0xff] %v889
        %v891 = vld [vmem:[%s412 + $0x10] sm:$0xff]
        %v892 = vsel %vm884, %v842, %v891
        %893 = vst [vmem:[%s412 + $0x10] sm:$0xff] %v892
        %v894 = vld [vmem:[%s412 + $0x18] sm:$0xff]
        %v895 = vsel %vm884, %v844, %v894
        %896 = vst [vmem:[%s412 + $0x18] sm:$0xff] %v895
        %v897 = vld [vmem:[%s412 + $0x20] sm:$0xff]
        %v898 = vsel %vm884, %v846, %v897
        %899 = vst [vmem:[%s412 + $0x20] sm:$0xff] %v898
        %v900 = vld [vmem:[%s412 + $0x28] sm:$0xff]
        %v901 = vsel %vm884, %v848, %v900
        %902 = vst [vmem:[%s412 + $0x28] sm:$0xff] %v901
        %v903 = vld [vmem:[%s412 + $0x30] sm:$0xff]
        %v904 = vsel %vm884, %v850, %v903
        %905 = vst [vmem:[%s412 + $0x30] sm:$0xff] %v904
        %v906 = vld [vmem:[%s412 + $0x38] sm:$0xff]
        %v907 = vsel %vm884, %v852, %v906
        %908 = vst [vmem:[%s412 + $0x38] sm:$0xff] %v907
        %v909 = vld [vmem:[%s412 + $0x40] sm:$0xff]
        %v910 = vsel %vm884, %v854, %v909
        %911 = vst [vmem:[%s412 + $0x40] sm:$0xff] %v910
        %v912 = vld [vmem:[%s412 + $0x48] sm:$0xff]
        %v913 = vsel %vm884, %v856, %v912
        %914 = vst [vmem:[%s412 + $0x48] sm:$0xff] %v913
        %v915 = vld [vmem:[%s412 + $0x50] sm:$0xff]
        %v916 = vsel %vm884, %v858, %v915
        %917 = vst [vmem:[%s412 + $0x50] sm:$0xff] %v916
        %v918 = vld [vmem:[%s412 + $0x58] sm:$0xff]
        %v919 = vsel %vm884, %v860, %v918
        %920 = vst [vmem:[%s412 + $0x58] sm:$0xff] %v919
        %v921 = vld [vmem:[%s412 + $0x60] sm:$0xff]
        %v922 = vsel %vm884, %v862, %v921
        %923 = vst [vmem:[%s412 + $0x60] sm:$0xff] %v922
        %v924 = vld [vmem:[%s412 + $0x68] sm:$0xff]
        %v925 = vsel %vm884, %v864, %v924
        %926 = vst [vmem:[%s412 + $0x68] sm:$0xff] %v925
        %v927 = vld [vmem:[%s412 + $0x70] sm:$0xff]
        %v928 = vsel %vm884, %v866, %v927
        %929 = vst [vmem:[%s412 + $0x70] sm:$0xff] %v928
        %v930 = vld [vmem:[%s168] sm:$0xf]
        %v931 = vld [vmem:[%s168 + $0x4] sm:$0xf]
        %v932 = vld [vmem:[%s168 + $0x8] sm:$0xf]
        %v933 = vld [vmem:[%s168 + $0xc] sm:$0xf]
        %v934 = vld [vmem:[%s168 + $0x10] sm:$0xf]
        %v935 = vld [vmem:[%s168 + $0x14] sm:$0xf]
        %v936 = vld [vmem:[%s168 + $0x18] sm:$0xf]
        %v937 = vld [vmem:[%s168 + $0x1c] sm:$0xf]
        %v938 = vld [vmem:[%s168 + $0x20] sm:$0xf]
        %v939 = vld [vmem:[%s168 + $0x24] sm:$0xf]
        %v940 = vld [vmem:[%s168 + $0x28] sm:$0xf]
        %v941 = vld [vmem:[%s168 + $0x2c] sm:$0xf]
        %v942 = vld [vmem:[%s168 + $0x30] sm:$0xf]
        %v943 = vld [vmem:[%s168 + $0x34] sm:$0xf]
        %v944 = vld [vmem:[%s168 + $0x38] sm:$0xf]
        %v945 = vld [vmem:[%s168 + $0x3c] sm:$0xf]
        %v946 = vld [vmem:[%s168 + $0x40] sm:$0xf]
        %v947 = vld [vmem:[%s168 + $0x44] sm:$0xf]
        %v948 = vld [vmem:[%s168 + $0x48] sm:$0xf]
        %v949 = vld [vmem:[%s168 + $0x4c] sm:$0xf]
        %v950 = vld [vmem:[%s168 + $0x50] sm:$0xf]
        %v951 = vld [vmem:[%s168 + $0x54] sm:$0xf]
        %v952 = vld [vmem:[%s168 + $0x58] sm:$0xf]
        %v953 = vld [vmem:[%s168 + $0x5c] sm:$0xf]
        %v954 = vld [vmem:[%s168 + $0x60] sm:$0xf]
        %v955 = vld [vmem:[%s168 + $0x64] sm:$0xf]
        %v956 = vld [vmem:[%s168 + $0x68] sm:$0xf]
        %v957 = vld [vmem:[%s168 + $0x6c] sm:$0xf]
        %v958 = vld [vmem:[%s168 + $0x70] sm:$0xf]
        %v959 = vld [vmem:[%s168 + $0x74] sm:$0xf]
        %v960 = vld [vmem:[%s168 + $0x78] sm:$0xf]
        %v961 = vld [vmem:[%s168 + $0x7c] sm:$0xf]
        %v994 = vunpack.c.l.b16 %v930
        %v995 = vunpack.c.l.b16 %v931
        %v996 = vunpack.c.l.b16 %v932
        %v997 = vunpack.c.l.b16 %v933
        %v998 = vunpack.c.l.b16 %v934
        %v999 = vunpack.c.l.b16 %v935
        %v1000 = vunpack.c.l.b16 %v936
        %v1001 = vunpack.c.l.b16 %v937
        %v1002 = vunpack.c.l.b16 %v938
        %v1003 = vunpack.c.l.b16 %v939
        %v1004 = vunpack.c.l.b16 %v940
        %v1005 = vunpack.c.l.b16 %v941
        %v1006 = vunpack.c.l.b16 %v942
        %v1007 = vunpack.c.l.b16 %v943
        %v1008 = vunpack.c.l.b16 %v944
        %v1009 = vunpack.c.l.b16 %v945
        %v1010 = vunpack.c.l.b16 %v946
        %v1011 = vunpack.c.l.b16 %v947
        %v1012 = vunpack.c.l.b16 %v948
        %v1013 = vunpack.c.l.b16 %v949
        %v1014 = vunpack.c.l.b16 %v950
        %v1015 = vunpack.c.l.b16 %v951
        %v1016 = vunpack.c.l.b16 %v952
        %v1017 = vunpack.c.l.b16 %v953
        %v1018 = vunpack.c.l.b16 %v954
        %v1019 = vunpack.c.l.b16 %v955
        %v1020 = vunpack.c.l.b16 %v956
        %v1021 = vunpack.c.l.b16 %v957
        %v1022 = vunpack.c.l.b16 %v958
        %v1023 = vunpack.c.l.b16 %v959
        %v1024 = vunpack.c.l.b16 %v960
        %v1025 = vunpack.c.l.b16 %v961
        %v1026 = vpack.c.b16 %v995, %v994
        %v1027 = vpack.c.b16 %v997, %v996
        %v1028 = vpack.c.b16 %v999, %v998
        %v1029 = vpack.c.b16 %v1001, %v1000
        %v1030 = vpack.c.b16 %v1003, %v1002
        %v1031 = vpack.c.b16 %v1005, %v1004
        %v1032 = vpack.c.b16 %v1007, %v1006
        %v1033 = vpack.c.b16 %v1009, %v1008
        %v1034 = vpack.c.b16 %v1011, %v1010
        %v1035 = vpack.c.b16 %v1013, %v1012
        %v1036 = vpack.c.b16 %v1015, %v1014
        %v1037 = vpack.c.b16 %v1017, %v1016
        %v1038 = vpack.c.b16 %v1019, %v1018
        %v1039 = vpack.c.b16 %v1021, %v1020
        %v1040 = vpack.c.b16 %v1023, %v1022
        %v1041 = vpack.c.b16 %v1025, %v1024
        %v1043 = vshrl.u32 %v1026, 16
        %v1045 = vrot.slane %v1043, 7
        %v1046 = vshll.u32 %v1026, 16
        %v1048 = vor.u32 %v1045, %v1046
        %v1050 = vshrl.u32 %v1027, 16
        %v1052 = vrot.slane %v1050, 7
        %v1053 = vshll.u32 %v1027, 16
        %v1055 = vor.u32 %v1052, %v1053
        %v1057 = vshrl.u32 %v1028, 16
        %v1059 = vrot.slane %v1057, 7
        %v1060 = vshll.u32 %v1028, 16
        %v1062 = vor.u32 %v1059, %v1060
        %v1064 = vshrl.u32 %v1029, 16
        %v1066 = vrot.slane %v1064, 7
        %v1067 = vshll.u32 %v1029, 16
        %v1069 = vor.u32 %v1066, %v1067
        %v1071 = vshrl.u32 %v1030, 16
        %v1073 = vrot.slane %v1071, 7
        %v1074 = vshll.u32 %v1030, 16
        %v1076 = vor.u32 %v1073, %v1074
        %v1078 = vshrl.u32 %v1031, 16
        %v1080 = vrot.slane %v1078, 7
        %v1081 = vshll.u32 %v1031, 16
        %v1083 = vor.u32 %v1080, %v1081
        %v1085 = vshrl.u32 %v1032, 16
        %v1087 = vrot.slane %v1085, 7
        %v1088 = vshll.u32 %v1032, 16
        %v1090 = vor.u32 %v1087, %v1088
        %v1092 = vshrl.u32 %v1033, 16
        %v1094 = vrot.slane %v1092, 7
        %v1095 = vshll.u32 %v1033, 16
        %v1097 = vor.u32 %v1094, %v1095
        %v1099 = vshrl.u32 %v1034, 16
        %v1101 = vrot.slane %v1099, 7
        %v1102 = vshll.u32 %v1034, 16
        %v1104 = vor.u32 %v1101, %v1102
        %v1106 = vshrl.u32 %v1035, 16
        %v1108 = vrot.slane %v1106, 7
        %v1109 = vshll.u32 %v1035, 16
        %v1111 = vor.u32 %v1108, %v1109
        %v1113 = vshrl.u32 %v1036, 16
        %v1115 = vrot.slane %v1113, 7
        %v1116 = vshll.u32 %v1036, 16
        %v1118 = vor.u32 %v1115, %v1116
        %v1120 = vshrl.u32 %v1037, 16
        %v1122 = vrot.slane %v1120, 7
        %v1123 = vshll.u32 %v1037, 16
        %v1125 = vor.u32 %v1122, %v1123
        %v1127 = vshrl.u32 %v1038, 16
        %v1129 = vrot.slane %v1127, 7
        %v1130 = vshll.u32 %v1038, 16
        %v1132 = vor.u32 %v1129, %v1130
        %v1134 = vshrl.u32 %v1039, 16
        %v1136 = vrot.slane %v1134, 7
        %v1137 = vshll.u32 %v1039, 16
        %v1139 = vor.u32 %v1136, %v1137
        %v1141 = vshrl.u32 %v1040, 16
        %v1143 = vrot.slane %v1141, 7
        %v1144 = vshll.u32 %v1040, 16
        %v1146 = vor.u32 %v1143, %v1144
        %v1148 = vshrl.u32 %v1041, 16
        %v1150 = vrot.slane %v1148, 7
        %v1151 = vshll.u32 %v1041, 16
        %v1153 = vor.u32 %v1150, %v1151
        %1154 = vrot.lane.b32.xlu0 %v1048, 12
        %v1155 = vpop.permute.xlu0 %1154
        %1156 = vrot.lane.b32.xlu0 %v1055, 12
        %v1157 = vpop.permute.xlu0 %1156
        %1158 = vrot.lane.b32.xlu0 %v1062, 12
        %v1159 = vpop.permute.xlu0 %1158
        %1160 = vrot.lane.b32.xlu0 %v1069, 12
        %v1161 = vpop.permute.xlu0 %1160
        %1162 = vrot.lane.b32.xlu0 %v1076, 12
        %v1163 = vpop.permute.xlu0 %1162
        %1164 = vrot.lane.b32.xlu0 %v1083, 12
        %v1165 = vpop.permute.xlu0 %1164
        %1166 = vrot.lane.b32.xlu0 %v1090, 12
        %v1167 = vpop.permute.xlu0 %1166
        %1168 = vrot.lane.b32.xlu0 %v1097, 12
        %v1169 = vpop.permute.xlu0 %1168
        %1170 = vrot.lane.b32.xlu0 %v1104, 12
        %v1171 = vpop.permute.xlu0 %1170
        %1172 = vrot.lane.b32.xlu0 %v1111, 12
        %v1173 = vpop.permute.xlu0 %1172
        %1174 = vrot.lane.b32.xlu0 %v1118, 12
        %v1175 = vpop.permute.xlu0 %1174
        %1176 = vrot.lane.b32.xlu0 %v1125, 12
        %v1177 = vpop.permute.xlu0 %1176
        %1178 = vrot.lane.b32.xlu0 %v1132, 12
        %v1179 = vpop.permute.xlu0 %1178
        %1180 = vrot.lane.b32.xlu0 %v1139, 12
        %v1181 = vpop.permute.xlu0 %1180
        %1182 = vrot.lane.b32.xlu0 %v1146, 12
        %v1183 = vpop.permute.xlu0 %1182
        %1184 = vrot.lane.b32.xlu0 %v1153, 12
        %v1185 = vpop.permute.xlu0 %1184
        %vm1202 = vcmask 130144
        %vm1203 = vmand %vm1202, %vm414
        %v1204 = vld [vmem:[#allocation2] sm:$0xff]
        %v1205 = vsel %vm1203, %v1155, %v1204
        %1206 = vst [vmem:[#allocation2] sm:$0xff] %v1205
        %v1207 = vld [vmem:[#allocation2 + $0x8] sm:$0xff]
        %v1208 = vsel %vm1203, %v1157, %v1207
        %1209 = vst [vmem:[#allocation2 + $0x8] sm:$0xff] %v1208
        %v1210 = vld [vmem:[#allocation2 + $0x10] sm:$0xff]
        %v1211 = vsel %vm1203, %v1159, %v1210
        %1212 = vst [vmem:[#allocation2 + $0x10] sm:$0xff] %v1211
        %v1213 = vld [vmem:[#allocation2 + $0x18] sm:$0xff]
        %v1214 = vsel %vm1203, %v1161, %v1213
        %1215 = vst [vmem:[#allocation2 + $0x18] sm:$0xff] %v1214
        %v1216 = vld [vmem:[#allocation2 + $0x20] sm:$0xff]
        %v1217 = vsel %vm1203, %v1163, %v1216
        %1218 = vst [vmem:[#allocation2 + $0x20] sm:$0xff] %v1217
        %v1219 = vld [vmem:[#allocation2 + $0x28] sm:$0xff]
        %v1220 = vsel %vm1203, %v1165, %v1219
        %1221 = vst [vmem:[#allocation2 + $0x28] sm:$0xff] %v1220
        %v1222 = vld [vmem:[#allocation2 + $0x30] sm:$0xff]
        %v1223 = vsel %vm1203, %v1167, %v1222
        %1224 = vst [vmem:[#allocation2 + $0x30] sm:$0xff] %v1223
        %v1225 = vld [vmem:[#allocation2 + $0x38] sm:$0xff]
        %v1226 = vsel %vm1203, %v1169, %v1225
        %1227 = vst [vmem:[#allocation2 + $0x38] sm:$0xff] %v1226
        %v1228 = vld [vmem:[#allocation2 + $0x40] sm:$0xff]
        %v1229 = vsel %vm1203, %v1171, %v1228
        %1230 = vst [vmem:[#allocation2 + $0x40] sm:$0xff] %v1229
        %v1231 = vld [vmem:[#allocation2 + $0x48] sm:$0xff]
        %v1232 = vsel %vm1203, %v1173, %v1231
        %1233 = vst [vmem:[#allocation2 + $0x48] sm:$0xff] %v1232
        %v1234 = vld [vmem:[#allocation2 + $0x50] sm:$0xff]
        %v1235 = vsel %vm1203, %v1175, %v1234
        %1236 = vst [vmem:[#allocation2 + $0x50] sm:$0xff] %v1235
        %v1237 = vld [vmem:[#allocation2 + $0x58] sm:$0xff]
        %v1238 = vsel %vm1203, %v1177, %v1237
        %1239 = vst [vmem:[#allocation2 + $0x58] sm:$0xff] %v1238
        %v1240 = vld [vmem:[#allocation2 + $0x60] sm:$0xff]
        %v1241 = vsel %vm1203, %v1179, %v1240
        %1242 = vst [vmem:[#allocation2 + $0x60] sm:$0xff] %v1241
        %v1243 = vld [vmem:[#allocation2 + $0x68] sm:$0xff]
        %v1244 = vsel %vm1203, %v1181, %v1243
        %1245 = vst [vmem:[#allocation2 + $0x68] sm:$0xff] %v1244
        %v1246 = vld [vmem:[#allocation2 + $0x70] sm:$0xff]
        %v1247 = vsel %vm1203, %v1183, %v1246
        %1248 = vst [vmem:[#allocation2 + $0x70] sm:$0xff] %v1247
        %v1249 = vld [vmem:[#allocation2 + $0x78] sm:$0xff]
        %v1250 = vsel %vm1203, %v1185, %v1249
        %1251 = vst [vmem:[#allocation2 + $0x78] sm:$0xff] %v1250
        %v1252 = vld [vmem:[%s168] sm:$0xf]
        %v1253 = vld [vmem:[%s168 + $0x4] sm:$0xf]
        %v1254 = vld [vmem:[%s168 + $0x8] sm:$0xf]
        %v1255 = vld [vmem:[%s168 + $0xc] sm:$0xf]
        %v1256 = vld [vmem:[%s168 + $0x10] sm:$0xf]
        %v1257 = vld [vmem:[%s168 + $0x14] sm:$0xf]
        %v1258 = vld [vmem:[%s168 + $0x18] sm:$0xf]
        %v1259 = vld [vmem:[%s168 + $0x1c] sm:$0xf]
        %v1260 = vld [vmem:[%s168 + $0x20] sm:$0xf]
        %v1261 = vld [vmem:[%s168 + $0x24] sm:$0xf]
        %v1262 = vld [vmem:[%s168 + $0x28] sm:$0xf]
        %v1263 = vld [vmem:[%s168 + $0x2c] sm:$0xf]
        %v1264 = vld [vmem:[%s168 + $0x30] sm:$0xf]
        %v1265 = vld [vmem:[%s168 + $0x34] sm:$0xf]
        %v1266 = vld [vmem:[%s168 + $0x38] sm:$0xf]
        %v1267 = vld [vmem:[%s168 + $0x3c] sm:$0xf]
        %v1268 = vld [vmem:[%s168 + $0x40] sm:$0xf]
        %v1269 = vld [vmem:[%s168 + $0x44] sm:$0xf]
        %v1270 = vld [vmem:[%s168 + $0x48] sm:$0xf]
        %v1271 = vld [vmem:[%s168 + $0x4c] sm:$0xf]
        %v1272 = vld [vmem:[%s168 + $0x50] sm:$0xf]
        %v1273 = vld [vmem:[%s168 + $0x54] sm:$0xf]
        %v1274 = vld [vmem:[%s168 + $0x58] sm:$0xf]
        %v1275 = vld [vmem:[%s168 + $0x5c] sm:$0xf]
        %v1276 = vld [vmem:[%s168 + $0x60] sm:$0xf]
        %v1277 = vld [vmem:[%s168 + $0x64] sm:$0xf]
        %v1278 = vld [vmem:[%s168 + $0x68] sm:$0xf]
        %v1279 = vld [vmem:[%s168 + $0x6c] sm:$0xf]
        %v1280 = vld [vmem:[%s168 + $0x70] sm:$0xf]
        %v1281 = vld [vmem:[%s168 + $0x74] sm:$0xf]
        %v1282 = vld [vmem:[%s168 + $0x78] sm:$0xf]
        %v1283 = vld [vmem:[%s168 + $0x7c] sm:$0xf]
        %v1316 = vunpack.c.l.b16 %v1252
        %v1317 = vunpack.c.l.b16 %v1253
        %v1318 = vunpack.c.l.b16 %v1254
        %v1319 = vunpack.c.l.b16 %v1255
        %v1320 = vunpack.c.l.b16 %v1256
        %v1321 = vunpack.c.l.b16 %v1257
        %v1322 = vunpack.c.l.b16 %v1258
        %v1323 = vunpack.c.l.b16 %v1259
        %v1324 = vunpack.c.l.b16 %v1260
        %v1325 = vunpack.c.l.b16 %v1261
        %v1326 = vunpack.c.l.b16 %v1262
        %v1327 = vunpack.c.l.b16 %v1263
        %v1328 = vunpack.c.l.b16 %v1264
        %v1329 = vunpack.c.l.b16 %v1265
        %v1330 = vunpack.c.l.b16 %v1266
        %v1331 = vunpack.c.l.b16 %v1267
        %v1332 = vunpack.c.l.b16 %v1268
        %v1333 = vunpack.c.l.b16 %v1269
        %v1334 = vunpack.c.l.b16 %v1270
        %v1335 = vunpack.c.l.b16 %v1271
        %v1336 = vunpack.c.l.b16 %v1272
        %v1337 = vunpack.c.l.b16 %v1273
        %v1338 = vunpack.c.l.b16 %v1274
        %v1339 = vunpack.c.l.b16 %v1275
        %v1340 = vunpack.c.l.b16 %v1276
        %v1341 = vunpack.c.l.b16 %v1277
        %v1342 = vunpack.c.l.b16 %v1278
        %v1343 = vunpack.c.l.b16 %v1279
        %v1344 = vunpack.c.l.b16 %v1280
        %v1345 = vunpack.c.l.b16 %v1281
        %v1346 = vunpack.c.l.b16 %v1282
        %v1347 = vunpack.c.l.b16 %v1283
        %v1348 = vpack.c.b16 %v1317, %v1316
        %v1349 = vpack.c.b16 %v1319, %v1318
        %v1350 = vpack.c.b16 %v1321, %v1320
        %v1351 = vpack.c.b16 %v1323, %v1322
        %v1352 = vpack.c.b16 %v1325, %v1324
        %v1353 = vpack.c.b16 %v1327, %v1326
        %v1354 = vpack.c.b16 %v1329, %v1328
        %v1355 = vpack.c.b16 %v1331, %v1330
        %v1356 = vpack.c.b16 %v1333, %v1332
        %v1357 = vpack.c.b16 %v1335, %v1334
        %v1358 = vpack.c.b16 %v1337, %v1336
        %v1359 = vpack.c.b16 %v1339, %v1338
        %v1360 = vpack.c.b16 %v1341, %v1340
        %v1361 = vpack.c.b16 %v1343, %v1342
        %v1362 = vpack.c.b16 %v1345, %v1344
        %v1363 = vpack.c.b16 %v1347, %v1346
        %1364 = vrot.lane.b32.xlu0 %v1348, 16
        %v1365 = vpop.permute.xlu0 %1364
        %1366 = vrot.lane.b32.xlu0 %v1349, 16
        %v1367 = vpop.permute.xlu0 %1366
        %1368 = vrot.lane.b32.xlu0 %v1350, 16
        %v1369 = vpop.permute.xlu0 %1368
        %1370 = vrot.lane.b32.xlu0 %v1351, 16
        %v1371 = vpop.permute.xlu0 %1370
        %1372 = vrot.lane.b32.xlu0 %v1352, 16
        %v1373 = vpop.permute.xlu0 %1372
        %1374 = vrot.lane.b32.xlu0 %v1353, 16
        %v1375 = vpop.permute.xlu0 %1374
        %1376 = vrot.lane.b32.xlu0 %v1354, 16
        %v1377 = vpop.permute.xlu0 %1376
        %1378 = vrot.lane.b32.xlu0 %v1355, 16
        %v1379 = vpop.permute.xlu0 %1378
        %1380 = vrot.lane.b32.xlu0 %v1356, 16
        %v1381 = vpop.permute.xlu0 %1380
        %1382 = vrot.lane.b32.xlu0 %v1357, 16
        %v1383 = vpop.permute.xlu0 %1382
        %1384 = vrot.lane.b32.xlu0 %v1358, 16
        %v1385 = vpop.permute.xlu0 %1384
        %1386 = vrot.lane.b32.xlu0 %v1359, 16
        %v1387 = vpop.permute.xlu0 %1386
        %1388 = vrot.lane.b32.xlu0 %v1360, 16
        %v1389 = vpop.permute.xlu0 %1388
        %1390 = vrot.lane.b32.xlu0 %v1361, 16
        %v1391 = vpop.permute.xlu0 %1390
        %1392 = vrot.lane.b32.xlu0 %v1362, 16
        %v1393 = vpop.permute.xlu0 %1392
        %1394 = vrot.lane.b32.xlu0 %v1363, 16
        %v1395 = vpop.permute.xlu0 %1394
        %vm1412 = vcmask 162944
        %1413 = vst.msk [vmem:[#allocation2] sm:$0xff] %vm1412, %v1365
        %1414 = vst.msk [vmem:[#allocation2 + $0x8] sm:$0xff] %vm1412, %v1367
        %1415 = vst.msk [vmem:[#allocation2 + $0x10] sm:$0xff] %vm1412, %v1369
        %1416 = vst.msk [vmem:[#allocation2 + $0x18] sm:$0xff] %vm1412, %v1371
        %1417 = vst.msk [vmem:[#allocation2 + $0x20] sm:$0xff] %vm1412, %v1373
        %1418 = vst.msk [vmem:[#allocation2 + $0x28] sm:$0xff] %vm1412, %v1375
        %1419 = vst.msk [vmem:[#allocation2 + $0x30] sm:$0xff] %vm1412, %v1377
        %1420 = vst.msk [vmem:[#allocation2 + $0x38] sm:$0xff] %vm1412, %v1379
        %1421 = vst.msk [vmem:[#allocation2 + $0x40] sm:$0xff] %vm1412, %v1381
        %1422 = vst.msk [vmem:[#allocation2 + $0x48] sm:$0xff] %vm1412, %v1383
        %1423 = vst.msk [vmem:[#allocation2 + $0x50] sm:$0xff] %vm1412, %v1385
        %1424 = vst.msk [vmem:[#allocation2 + $0x58] sm:$0xff] %vm1412, %v1387
        %1425 = vst.msk [vmem:[#allocation2 + $0x60] sm:$0xff] %vm1412, %v1389
        %1426 = vst.msk [vmem:[#allocation2 + $0x68] sm:$0xff] %vm1412, %v1391
        %1427 = vst.msk [vmem:[#allocation2 + $0x70] sm:$0xff] %vm1412, %v1393
        %1428 = vst.msk [vmem:[#allocation2 + $0x78] sm:$0xff] %vm1412, %v1395
        %v1429 = vld [vmem:[%s168] sm:$0xf]
        %v1430 = vld [vmem:[%s168 + $0x4] sm:$0xf]
        %v1431 = vld [vmem:[%s168 + $0x8] sm:$0xf]
        %v1432 = vld [vmem:[%s168 + $0xc] sm:$0xf]
        %v1433 = vld [vmem:[%s168 + $0x10] sm:$0xf]
        %v1434 = vld [vmem:[%s168 + $0x14] sm:$0xf]
        %v1435 = vld [vmem:[%s168 + $0x18] sm:$0xf]
        %v1436 = vld [vmem:[%s168 + $0x1c] sm:$0xf]
        %v1437 = vld [vmem:[%s168 + $0x20] sm:$0xf]
        %v1438 = vld [vmem:[%s168 + $0x24] sm:$0xf]
        %v1439 = vld [vmem:[%s168 + $0x28] sm:$0xf]
        %v1440 = vld [vmem:[%s168 + $0x2c] sm:$0xf]
        %v1441 = vld [vmem:[%s168 + $0x30] sm:$0xf]
        %v1442 = vld [vmem:[%s168 + $0x34] sm:$0xf]
        %v1443 = vld [vmem:[%s168 + $0x38] sm:$0xf]
        %v1444 = vld [vmem:[%s168 + $0x3c] sm:$0xf]
        %v1445 = vld [vmem:[%s168 + $0x40] sm:$0xf]
        %v1446 = vld [vmem:[%s168 + $0x44] sm:$0xf]
        %v1447 = vld [vmem:[%s168 + $0x48] sm:$0xf]
        %v1448 = vld [vmem:[%s168 + $0x4c] sm:$0xf]
        %v1449 = vld [vmem:[%s168 + $0x50] sm:$0xf]
        %v1450 = vld [vmem:[%s168 + $0x54] sm:$0xf]
        %v1451 = vld [vmem:[%s168 + $0x58] sm:$0xf]
        %v1452 = vld [vmem:[%s168 + $0x5c] sm:$0xf]
        %v1453 = vld [vmem:[%s168 + $0x60] sm:$0xf]
        %v1454 = vld [vmem:[%s168 + $0x64] sm:$0xf]
        %v1455 = vld [vmem:[%s168 + $0x68] sm:$0xf]
        %v1456 = vld [vmem:[%s168 + $0x6c] sm:$0xf]
        %v1457 = vld [vmem:[%s168 + $0x70] sm:$0xf]
        %v1458 = vld [vmem:[%s168 + $0x74] sm:$0xf]
        %v1459 = vld [vmem:[%s168 + $0x78] sm:$0xf]
        %v1460 = vld [vmem:[%s168 + $0x7c] sm:$0xf]
        %v1493 = vunpack.c.l.b16 %v1429
        %v1494 = vunpack.c.l.b16 %v1430
        %v1495 = vunpack.c.l.b16 %v1431
        %v1496 = vunpack.c.l.b16 %v1432
        %v1497 = vunpack.c.l.b16 %v1433
        %v1498 = vunpack.c.l.b16 %v1434
        %v1499 = vunpack.c.l.b16 %v1435
        %v1500 = vunpack.c.l.b16 %v1436
        %v1501 = vunpack.c.l.b16 %v1437
        %v1502 = vunpack.c.l.b16 %v1438
        %v1503 = vunpack.c.l.b16 %v1439
        %v1504 = vunpack.c.l.b16 %v1440
        %v1505 = vunpack.c.l.b16 %v1441
        %v1506 = vunpack.c.l.b16 %v1442
        %v1507 = vunpack.c.l.b16 %v1443
        %v1508 = vunpack.c.l.b16 %v1444
        %v1509 = vunpack.c.l.b16 %v1445
        %v1510 = vunpack.c.l.b16 %v1446
        %v1511 = vunpack.c.l.b16 %v1447
        %v1512 = vunpack.c.l.b16 %v1448
        %v1513 = vunpack.c.l.b16 %v1449
        %v1514 = vunpack.c.l.b16 %v1450
        %v1515 = vunpack.c.l.b16 %v1451
        %v1516 = vunpack.c.l.b16 %v1452
        %v1517 = vunpack.c.l.b16 %v1453
        %v1518 = vunpack.c.l.b16 %v1454
        %v1519 = vunpack.c.l.b16 %v1455
        %v1520 = vunpack.c.l.b16 %v1456
        %v1521 = vunpack.c.l.b16 %v1457
        %v1522 = vunpack.c.l.b16 %v1458
        %v1523 = vunpack.c.l.b16 %v1459
        %v1524 = vunpack.c.l.b16 %v1460
        %v1525 = vpack.c.b16 %v1494, %v1493
        %v1526 = vpack.c.b16 %v1496, %v1495
        %v1527 = vpack.c.b16 %v1498, %v1497
        %v1528 = vpack.c.b16 %v1500, %v1499
        %v1529 = vpack.c.b16 %v1502, %v1501
        %v1530 = vpack.c.b16 %v1504, %v1503
        %v1531 = vpack.c.b16 %v1506, %v1505
        %v1532 = vpack.c.b16 %v1508, %v1507
        %v1533 = vpack.c.b16 %v1510, %v1509
        %v1534 = vpack.c.b16 %v1512, %v1511
        %v1535 = vpack.c.b16 %v1514, %v1513
        %v1536 = vpack.c.b16 %v1516, %v1515
        %v1537 = vpack.c.b16 %v1518, %v1517
        %v1538 = vpack.c.b16 %v1520, %v1519
        %v1539 = vpack.c.b16 %v1522, %v1521
        %v1540 = vpack.c.b16 %v1524, %v1523
        %v1542 = vshrl.u32 %v1525, 16
        %v1544 = vshll.u32 %v1525, 16
        %v1546 = vrot.slane %v1544, 1
        %v1547 = vor.u32 %v1542, %v1546
        %v1549 = vshrl.u32 %v1526, 16
        %v1551 = vshll.u32 %v1526, 16
        %v1553 = vrot.slane %v1551, 1
        %v1554 = vor.u32 %v1549, %v1553
        %v1556 = vshrl.u32 %v1527, 16
        %v1558 = vshll.u32 %v1527, 16
        %v1560 = vrot.slane %v1558, 1
        %v1561 = vor.u32 %v1556, %v1560
        %v1563 = vshrl.u32 %v1528, 16
        %v1565 = vshll.u32 %v1528, 16
        %v1567 = vrot.slane %v1565, 1
        %v1568 = vor.u32 %v1563, %v1567
        %v1570 = vshrl.u32 %v1529, 16
        %v1572 = vshll.u32 %v1529, 16
        %v1574 = vrot.slane %v1572, 1
        %v1575 = vor.u32 %v1570, %v1574
        %v1577 = vshrl.u32 %v1530, 16
        %v1579 = vshll.u32 %v1530, 16
        %v1581 = vrot.slane %v1579, 1
        %v1582 = vor.u32 %v1577, %v1581
        %v1584 = vshrl.u32 %v1531, 16
        %v1586 = vshll.u32 %v1531, 16
        %v1588 = vrot.slane %v1586, 1
        %v1589 = vor.u32 %v1584, %v1588
        %v1591 = vshrl.u32 %v1532, 16
        %v1593 = vshll.u32 %v1532, 16
        %v1595 = vrot.slane %v1593, 1
        %v1596 = vor.u32 %v1591, %v1595
        %v1598 = vshrl.u32 %v1533, 16
        %v1600 = vshll.u32 %v1533, 16
        %v1602 = vrot.slane %v1600, 1
        %v1603 = vor.u32 %v1598, %v1602
        %v1605 = vshrl.u32 %v1534, 16
        %v1607 = vshll.u32 %v1534, 16
        %v1609 = vrot.slane %v1607, 1
        %v1610 = vor.u32 %v1605, %v1609
        %v1612 = vshrl.u32 %v1535, 16
        %v1614 = vshll.u32 %v1535, 16
        %v1616 = vrot.slane %v1614, 1
        %v1617 = vor.u32 %v1612, %v1616
        %v1619 = vshrl.u32 %v1536, 16
        %v1621 = vshll.u32 %v1536, 16
        %v1623 = vrot.slane %v1621, 1
        %v1624 = vor.u32 %v1619, %v1623
        %v1626 = vshrl.u32 %v1537, 16
        %v1628 = vshll.u32 %v1537, 16
        %v1630 = vrot.slane %v1628, 1
        %v1631 = vor.u32 %v1626, %v1630
        %v1633 = vshrl.u32 %v1538, 16
        %v1635 = vshll.u32 %v1538, 16
        %v1637 = vrot.slane %v1635, 1
        %v1638 = vor.u32 %v1633, %v1637
        %v1640 = vshrl.u32 %v1539, 16
        %v1642 = vshll.u32 %v1539, 16
        %v1644 = vrot.slane %v1642, 1
        %v1645 = vor.u32 %v1640, %v1644
        %v1647 = vshrl.u32 %v1540, 16
        %v1649 = vshll.u32 %v1540, 16
        %v1651 = vrot.slane %v1649, 1
        %v1652 = vor.u32 %v1647, %v1651
        %1653 = vrot.lane.b32.xlu0 %v1547, 20
        %v1654 = vpop.permute.xlu0 %1653
        %1655 = vrot.lane.b32.xlu0 %v1554, 20
        %v1656 = vpop.permute.xlu0 %1655
        %1657 = vrot.lane.b32.xlu0 %v1561, 20
        %v1658 = vpop.permute.xlu0 %1657
        %1659 = vrot.lane.b32.xlu0 %v1568, 20
        %v1660 = vpop.permute.xlu0 %1659
        %1661 = vrot.lane.b32.xlu0 %v1575, 20
        %v1662 = vpop.permute.xlu0 %1661
        %1663 = vrot.lane.b32.xlu0 %v1582, 20
        %v1664 = vpop.permute.xlu0 %1663
        %1665 = vrot.lane.b32.xlu0 %v1589, 20
        %v1666 = vpop.permute.xlu0 %1665
        %1667 = vrot.lane.b32.xlu0 %v1596, 20
        %v1668 = vpop.permute.xlu0 %1667
        %1669 = vrot.lane.b32.xlu0 %v1603, 20
        %v1670 = vpop.permute.xlu0 %1669
        %1671 = vrot.lane.b32.xlu0 %v1610, 20
        %v1672 = vpop.permute.xlu0 %1671
        %1673 = vrot.lane.b32.xlu0 %v1617, 20
        %v1674 = vpop.permute.xlu0 %1673
        %1675 = vrot.lane.b32.xlu0 %v1624, 20
        %v1676 = vpop.permute.xlu0 %1675
        %1677 = vrot.lane.b32.xlu0 %v1631, 20
        %v1678 = vpop.permute.xlu0 %1677
        %1679 = vrot.lane.b32.xlu0 %v1638, 20
        %v1680 = vpop.permute.xlu0 %1679
        %1681 = vrot.lane.b32.xlu0 %v1645, 20
        %v1682 = vpop.permute.xlu0 %1681
        %1683 = vrot.lane.b32.xlu0 %v1652, 20
        %v1684 = vpop.permute.xlu0 %1683
        %vm1701 = vcmask 195744
        %vm1702 = vmand %vm1701, %vm883
        %v1703 = vld [vmem:[#allocation2] sm:$0xff]
        %v1704 = vsel %vm1702, %v1654, %v1703
        %1705 = vst [vmem:[#allocation2] sm:$0xff] %v1704
        %v1706 = vld [vmem:[#allocation2 + $0x8] sm:$0xff]
        %v1707 = vsel %vm1702, %v1656, %v1706
        %1708 = vst [vmem:[#allocation2 + $0x8] sm:$0xff] %v1707
        %v1709 = vld [vmem:[#allocation2 + $0x10] sm:$0xff]
        %v1710 = vsel %vm1702, %v1658, %v1709
        %1711 = vst [vmem:[#allocation2 + $0x10] sm:$0xff] %v1710
        %v1712 = vld [vmem:[#allocation2 + $0x18] sm:$0xff]
        %v1713 = vsel %vm1702, %v1660, %v1712
        %1714 = vst [vmem:[#allocation2 + $0x18] sm:$0xff] %v1713
        %v1715 = vld [vmem:[#allocation2 + $0x20] sm:$0xff]
        %v1716 = vsel %vm1702, %v1662, %v1715
        %1717 = vst [vmem:[#allocation2 + $0x20] sm:$0xff] %v1716
        %v1718 = vld [vmem:[#allocation2 + $0x28] sm:$0xff]
        %v1719 = vsel %vm1702, %v1664, %v1718
        %1720 = vst [vmem:[#allocation2 + $0x28] sm:$0xff] %v1719
        %v1721 = vld [vmem:[#allocation2 + $0x30] sm:$0xff]
        %v1722 = vsel %vm1702, %v1666, %v1721
        %1723 = vst [vmem:[#allocation2 + $0x30] sm:$0xff] %v1722
        %v1724 = vld [vmem:[#allocation2 + $0x38] sm:$0xff]
        %v1725 = vsel %vm1702, %v1668, %v1724
        %1726 = vst [vmem:[#allocation2 + $0x38] sm:$0xff] %v1725
        %v1727 = vld [vmem:[#allocation2 + $0x40] sm:$0xff]
        %v1728 = vsel %vm1702, %v1670, %v1727
        %1729 = vst [vmem:[#allocation2 + $0x40] sm:$0xff] %v1728
        %v1730 = vld [vmem:[#allocation2 + $0x48] sm:$0xff]
        %v1731 = vsel %vm1702, %v1672, %v1730
        %1732 = vst [vmem:[#allocation2 + $0x48] sm:$0xff] %v1731
        %v1733 = vld [vmem:[#allocation2 + $0x50] sm:$0xff]
        %v1734 = vsel %vm1702, %v1674, %v1733
        %1735 = vst [vmem:[#allocation2 + $0x50] sm:$0xff] %v1734
        %v1736 = vld [vmem:[#allocation2 + $0x58] sm:$0xff]
        %v1737 = vsel %vm1702, %v1676, %v1736
        %1738 = vst [vmem:[#allocation2 + $0x58] sm:$0xff] %v1737
        %v1739 = vld [vmem:[#allocation2 + $0x60] sm:$0xff]
        %v1740 = vsel %vm1702, %v1678, %v1739
        %1741 = vst [vmem:[#allocation2 + $0x60] sm:$0xff] %v1740
        %v1742 = vld [vmem:[#allocation2 + $0x68] sm:$0xff]
        %v1743 = vsel %vm1702, %v1680, %v1742
        %1744 = vst [vmem:[#allocation2 + $0x68] sm:$0xff] %v1743
        %v1745 = vld [vmem:[#allocation2 + $0x70] sm:$0xff]
        %v1746 = vsel %vm1702, %v1682, %v1745
        %1747 = vst [vmem:[#allocation2 + $0x70] sm:$0xff] %v1746
        %v1748 = vld [vmem:[#allocation2 + $0x78] sm:$0xff]
        %v1749 = vsel %vm1702, %v1684, %v1748
        %1750 = vst [vmem:[#allocation2 + $0x78] sm:$0xff] %v1749
        %s1751 = scalar_lea.vmem %s168, 8
        %v1752 = vld [vmem:[%s1751] sm:$0xf]
        %v1753 = vld [vmem:[%s1751 + $0x4] sm:$0xf]
        %v1754 = vld [vmem:[%s1751 + $0x8] sm:$0xf]
        %v1755 = vld [vmem:[%s1751 + $0xc] sm:$0xf]
        %v1756 = vld [vmem:[%s1751 + $0x10] sm:$0xf]
        %v1757 = vld [vmem:[%s1751 + $0x14] sm:$0xf]
        %v1758 = vld [vmem:[%s1751 + $0x18] sm:$0xf]
        %v1759 = vld [vmem:[%s1751 + $0x1c] sm:$0xf]
        %v1760 = vld [vmem:[%s1751 + $0x20] sm:$0xf]
        %v1761 = vld [vmem:[%s1751 + $0x24] sm:$0xf]
        %v1762 = vld [vmem:[%s1751 + $0x28] sm:$0xf]
        %v1763 = vld [vmem:[%s1751 + $0x2c] sm:$0xf]
        %v1764 = vld [vmem:[%s1751 + $0x30] sm:$0xf]
        %v1765 = vld [vmem:[%s1751 + $0x34] sm:$0xf]
        %v1766 = vld [vmem:[%s1751 + $0x38] sm:$0xf]
        %v1767 = vld [vmem:[%s1751 + $0x3c] sm:$0xf]
        %v1768 = vld [vmem:[%s1751 + $0x40] sm:$0xf]
        %v1769 = vld [vmem:[%s1751 + $0x44] sm:$0xf]
        %v1770 = vld [vmem:[%s1751 + $0x48] sm:$0xf]
        %v1771 = vld [vmem:[%s1751 + $0x4c] sm:$0xf]
        %v1772 = vld [vmem:[%s1751 + $0x50] sm:$0xf]
        %v1773 = vld [vmem:[%s1751 + $0x54] sm:$0xf]
        %v1774 = vld [vmem:[%s1751 + $0x58] sm:$0xf]
        %v1775 = vld [vmem:[%s1751 + $0x5c] sm:$0xf]
        %v1776 = vld [vmem:[%s1751 + $0x60] sm:$0xf]
        %v1777 = vld [vmem:[%s1751 + $0x64] sm:$0xf]
        %v1778 = vld [vmem:[%s1751 + $0x68] sm:$0xf]
        %v1779 = vld [vmem:[%s1751 + $0x6c] sm:$0xf]
        %v1780 = vld [vmem:[%s1751 + $0x70] sm:$0xf]
        %v1781 = vld [vmem:[%s1751 + $0x74] sm:$0xf]
        %v1812 = vunpack.c.l.b16 %v1752
        %v1813 = vunpack.c.l.b16 %v1753
        %v1814 = vunpack.c.l.b16 %v1754
        %v1815 = vunpack.c.l.b16 %v1755
        %v1816 = vunpack.c.l.b16 %v1756
        %v1817 = vunpack.c.l.b16 %v1757
        %v1818 = vunpack.c.l.b16 %v1758
        %v1819 = vunpack.c.l.b16 %v1759
        %v1820 = vunpack.c.l.b16 %v1760
        %v1821 = vunpack.c.l.b16 %v1761
        %v1822 = vunpack.c.l.b16 %v1762
        %v1823 = vunpack.c.l.b16 %v1763
        %v1824 = vunpack.c.l.b16 %v1764
        %v1825 = vunpack.c.l.b16 %v1765
        %v1826 = vunpack.c.l.b16 %v1766
        %v1827 = vunpack.c.l.b16 %v1767
        %v1828 = vunpack.c.l.b16 %v1768
        %v1829 = vunpack.c.l.b16 %v1769
        %v1830 = vunpack.c.l.b16 %v1770
        %v1831 = vunpack.c.l.b16 %v1771
        %v1832 = vunpack.c.l.b16 %v1772
        %v1833 = vunpack.c.l.b16 %v1773
        %v1834 = vunpack.c.l.b16 %v1774
        %v1835 = vunpack.c.l.b16 %v1775
        %v1836 = vunpack.c.l.b16 %v1776
        %v1837 = vunpack.c.l.b16 %v1777
        %v1838 = vunpack.c.l.b16 %v1778
        %v1839 = vunpack.c.l.b16 %v1779
        %v1840 = vunpack.c.l.b16 %v1780
        %v1841 = vunpack.c.l.b16 %v1781
        %v1842 = vpack.c.b16 %v1813, %v1812
        %v1843 = vpack.c.b16 %v1815, %v1814
        %v1844 = vpack.c.b16 %v1817, %v1816
        %v1845 = vpack.c.b16 %v1819, %v1818
        %v1846 = vpack.c.b16 %v1821, %v1820
        %v1847 = vpack.c.b16 %v1823, %v1822
        %v1848 = vpack.c.b16 %v1825, %v1824
        %v1849 = vpack.c.b16 %v1827, %v1826
        %v1850 = vpack.c.b16 %v1829, %v1828
        %v1851 = vpack.c.b16 %v1831, %v1830
        %v1852 = vpack.c.b16 %v1833, %v1832
        %v1853 = vpack.c.b16 %v1835, %v1834
        %v1854 = vpack.c.b16 %v1837, %v1836
        %v1855 = vpack.c.b16 %v1839, %v1838
        %v1856 = vpack.c.b16 %v1841, %v1840
        %v1858 = vshrl.u32 %v1842, 16
        %v1860 = vrot.slane %v1858, 7
        %v1861 = vshll.u32 %v1842, 16
        %v1863 = vor.u32 %v1860, %v1861
        %v1865 = vshrl.u32 %v1843, 16
        %v1867 = vrot.slane %v1865, 7
        %v1868 = vshll.u32 %v1843, 16
        %v1870 = vor.u32 %v1867, %v1868
        %v1872 = vshrl.u32 %v1844, 16
        %v1874 = vrot.slane %v1872, 7
        %v1875 = vshll.u32 %v1844, 16
        %v1877 = vor.u32 %v1874, %v1875
        %v1879 = vshrl.u32 %v1845, 16
        %v1881 = vrot.slane %v1879, 7
        %v1882 = vshll.u32 %v1845, 16
        %v1884 = vor.u32 %v1881, %v1882
        %v1886 = vshrl.u32 %v1846, 16
        %v1888 = vrot.slane %v1886, 7
        %v1889 = vshll.u32 %v1846, 16
        %v1891 = vor.u32 %v1888, %v1889
        %v1893 = vshrl.u32 %v1847, 16
        %v1895 = vrot.slane %v1893, 7
        %v1896 = vshll.u32 %v1847, 16
        %v1898 = vor.u32 %v1895, %v1896
        %v1900 = vshrl.u32 %v1848, 16
        %v1902 = vrot.slane %v1900, 7
        %v1903 = vshll.u32 %v1848, 16
        %v1905 = vor.u32 %v1902, %v1903
        %v1907 = vshrl.u32 %v1849, 16
        %v1909 = vrot.slane %v1907, 7
        %v1910 = vshll.u32 %v1849, 16
        %v1912 = vor.u32 %v1909, %v1910
        %v1914 = vshrl.u32 %v1850, 16
        %v1916 = vrot.slane %v1914, 7
        %v1917 = vshll.u32 %v1850, 16
        %v1919 = vor.u32 %v1916, %v1917
        %v1921 = vshrl.u32 %v1851, 16
        %v1923 = vrot.slane %v1921, 7
        %v1924 = vshll.u32 %v1851, 16
        %v1926 = vor.u32 %v1923, %v1924
        %v1928 = vshrl.u32 %v1852, 16
        %v1930 = vrot.slane %v1928, 7
        %v1931 = vshll.u32 %v1852, 16
        %v1933 = vor.u32 %v1930, %v1931
        %v1935 = vshrl.u32 %v1853, 16
        %v1937 = vrot.slane %v1935, 7
        %v1938 = vshll.u32 %v1853, 16
        %v1940 = vor.u32 %v1937, %v1938
        %v1942 = vshrl.u32 %v1854, 16
        %v1944 = vrot.slane %v1942, 7
        %v1945 = vshll.u32 %v1854, 16
        %v1947 = vor.u32 %v1944, %v1945
        %v1949 = vshrl.u32 %v1855, 16
        %v1951 = vrot.slane %v1949, 7
        %v1952 = vshll.u32 %v1855, 16
        %v1954 = vor.u32 %v1951, %v1952
        %v1956 = vshrl.u32 %v1856, 16
        %v1958 = vrot.slane %v1956, 7
        %v1959 = vshll.u32 %v1856, 16
        %v1961 = vor.u32 %v1958, %v1959
        %1962 = vrot.lane.b32.xlu0 %v1863, 24
        %v1963 = vpop.permute.xlu0 %1962
        %1964 = vrot.lane.b32.xlu0 %v1870, 24
        %v1965 = vpop.permute.xlu0 %1964
        %1966 = vrot.lane.b32.xlu0 %v1877, 24
        %v1967 = vpop.permute.xlu0 %1966
        %1968 = vrot.lane.b32.xlu0 %v1884, 24
        %v1969 = vpop.permute.xlu0 %1968
        %1970 = vrot.lane.b32.xlu0 %v1891, 24
        %v1971 = vpop.permute.xlu0 %1970
        %1972 = vrot.lane.b32.xlu0 %v1898, 24
        %v1973 = vpop.permute.xlu0 %1972
        %1974 = vrot.lane.b32.xlu0 %v1905, 24
        %v1975 = vpop.permute.xlu0 %1974
        %1976 = vrot.lane.b32.xlu0 %v1912, 24
        %v1977 = vpop.permute.xlu0 %1976
        %1978 = vrot.lane.b32.xlu0 %v1919, 24
        %v1979 = vpop.permute.xlu0 %1978
        %1980 = vrot.lane.b32.xlu0 %v1926, 24
        %v1981 = vpop.permute.xlu0 %1980
        %1982 = vrot.lane.b32.xlu0 %v1933, 24
        %v1983 = vpop.permute.xlu0 %1982
        %1984 = vrot.lane.b32.xlu0 %v1940, 24
        %v1985 = vpop.permute.xlu0 %1984
        %1986 = vrot.lane.b32.xlu0 %v1947, 24
        %v1987 = vpop.permute.xlu0 %1986
        %1988 = vrot.lane.b32.xlu0 %v1954, 24
        %v1989 = vpop.permute.xlu0 %1988
        %1990 = vrot.lane.b32.xlu0 %v1961, 24
        %v1991 = vpop.permute.xlu0 %1990
        %vm2007 = vcmask 228544
        %vm2008 = vmand %vm2007, %vm414
        %v2009 = vld [vmem:[#allocation2] sm:$0xff]
        %v2010 = vsel %vm2008, %v1963, %v2009
        %2011 = vst [vmem:[#allocation2] sm:$0xff] %v2010
        %v2012 = vld [vmem:[#allocation2 + $0x8] sm:$0xff]
        %v2013 = vsel %vm2008, %v1965, %v2012
        %2014 = vst [vmem:[#allocation2 + $0x8] sm:$0xff] %v2013
        %v2015 = vld [vmem:[#allocation2 + $0x10] sm:$0xff]
        %v2016 = vsel %vm2008, %v1967, %v2015
        %2017 = vst [vmem:[#allocation2 + $0x10] sm:$0xff] %v2016
        %v2018 = vld [vmem:[#allocation2 + $0x18] sm:$0xff]
        %v2019 = vsel %vm2008, %v1969, %v2018
        %2020 = vst [vmem:[#allocation2 + $0x18] sm:$0xff] %v2019
        %v2021 = vld [vmem:[#allocation2 + $0x20] sm:$0xff]
        %v2022 = vsel %vm2008, %v1971, %v2021
        %2023 = vst [vmem:[#allocation2 + $0x20] sm:$0xff] %v2022
        %v2024 = vld [vmem:[#allocation2 + $0x28] sm:$0xff]
        %v2025 = vsel %vm2008, %v1973, %v2024
        %2026 = vst [vmem:[#allocation2 + $0x28] sm:$0xff] %v2025
        %v2027 = vld [vmem:[#allocation2 + $0x30] sm:$0xff]
        %v2028 = vsel %vm2008, %v1975, %v2027
        %2029 = vst [vmem:[#allocation2 + $0x30] sm:$0xff] %v2028
        %v2030 = vld [vmem:[#allocation2 + $0x38] sm:$0xff]
        %v2031 = vsel %vm2008, %v1977, %v2030
        %2032 = vst [vmem:[#allocation2 + $0x38] sm:$0xff] %v2031
        %v2033 = vld [vmem:[#allocation2 + $0x40] sm:$0xff]
        %v2034 = vsel %vm2008, %v1979, %v2033
        %2035 = vst [vmem:[#allocation2 + $0x40] sm:$0xff] %v2034
        %v2036 = vld [vmem:[#allocation2 + $0x48] sm:$0xff]
        %v2037 = vsel %vm2008, %v1981, %v2036
        %2038 = vst [vmem:[#allocation2 + $0x48] sm:$0xff] %v2037
        %v2039 = vld [vmem:[#allocation2 + $0x50] sm:$0xff]
        %v2040 = vsel %vm2008, %v1983, %v2039
        %2041 = vst [vmem:[#allocation2 + $0x50] sm:$0xff] %v2040
        %v2042 = vld [vmem:[#allocation2 + $0x58] sm:$0xff]
        %v2043 = vsel %vm2008, %v1985, %v2042
        %2044 = vst [vmem:[#allocation2 + $0x58] sm:$0xff] %v2043
        %v2045 = vld [vmem:[#allocation2 + $0x60] sm:$0xff]
        %v2046 = vsel %vm2008, %v1987, %v2045
        %2047 = vst [vmem:[#allocation2 + $0x60] sm:$0xff] %v2046
        %v2048 = vld [vmem:[#allocation2 + $0x68] sm:$0xff]
        %v2049 = vsel %vm2008, %v1989, %v2048
        %2050 = vst [vmem:[#allocation2 + $0x68] sm:$0xff] %v2049
        %v2051 = vld [vmem:[#allocation2 + $0x70] sm:$0xff]
        %v2052 = vsel %vm2008, %v1991, %v2051
        %2053 = vst [vmem:[#allocation2 + $0x70] sm:$0xff] %v2052
        %v2054 = vld [vmem:[%s1751] sm:$0xf]
        %v2055 = vld [vmem:[%s1751 + $0x4] sm:$0xf]
        %v2056 = vld [vmem:[%s1751 + $0x8] sm:$0xf]
        %v2057 = vld [vmem:[%s1751 + $0xc] sm:$0xf]
        %v2058 = vld [vmem:[%s1751 + $0x10] sm:$0xf]
        %v2059 = vld [vmem:[%s1751 + $0x14] sm:$0xf]
        %v2060 = vld [vmem:[%s1751 + $0x18] sm:$0xf]
        %v2061 = vld [vmem:[%s1751 + $0x1c] sm:$0xf]
        %v2062 = vld [vmem:[%s1751 + $0x20] sm:$0xf]
        %v2063 = vld [vmem:[%s1751 + $0x24] sm:$0xf]
        %v2064 = vld [vmem:[%s1751 + $0x28] sm:$0xf]
        %v2065 = vld [vmem:[%s1751 + $0x2c] sm:$0xf]
        %v2066 = vld [vmem:[%s1751 + $0x30] sm:$0xf]
        %v2067 = vld [vmem:[%s1751 + $0x34] sm:$0xf]
        %v2068 = vld [vmem:[%s1751 + $0x38] sm:$0xf]
        %v2069 = vld [vmem:[%s1751 + $0x3c] sm:$0xf]
        %v2070 = vld [vmem:[%s1751 + $0x40] sm:$0xf]
        %v2071 = vld [vmem:[%s1751 + $0x44] sm:$0xf]
        %v2072 = vld [vmem:[%s1751 + $0x48] sm:$0xf]
        %v2073 = vld [vmem:[%s1751 + $0x4c] sm:$0xf]
        %v2074 = vld [vmem:[%s1751 + $0x50] sm:$0xf]
        %v2075 = vld [vmem:[%s1751 + $0x54] sm:$0xf]
        %v2076 = vld [vmem:[%s1751 + $0x58] sm:$0xf]
        %v2077 = vld [vmem:[%s1751 + $0x5c] sm:$0xf]
        %v2078 = vld [vmem:[%s1751 + $0x60] sm:$0xf]
        %v2079 = vld [vmem:[%s1751 + $0x64] sm:$0xf]
        %v2080 = vld [vmem:[%s1751 + $0x68] sm:$0xf]
        %v2081 = vld [vmem:[%s1751 + $0x6c] sm:$0xf]
        %v2082 = vld [vmem:[%s1751 + $0x70] sm:$0xf]
        %v2083 = vld [vmem:[%s1751 + $0x74] sm:$0xf]
        %v2114 = vunpack.c.l.b16 %v2054
        %v2115 = vunpack.c.l.b16 %v2055
        %v2116 = vunpack.c.l.b16 %v2056
        %v2117 = vunpack.c.l.b16 %v2057
        %v2118 = vunpack.c.l.b16 %v2058
        %v2119 = vunpack.c.l.b16 %v2059
        %v2120 = vunpack.c.l.b16 %v2060
        %v2121 = vunpack.c.l.b16 %v2061
        %v2122 = vunpack.c.l.b16 %v2062
        %v2123 = vunpack.c.l.b16 %v2063
        %v2124 = vunpack.c.l.b16 %v2064
        %v2125 = vunpack.c.l.b16 %v2065
        %v2126 = vunpack.c.l.b16 %v2066
        %v2127 = vunpack.c.l.b16 %v2067
        %v2128 = vunpack.c.l.b16 %v2068
        %v2129 = vunpack.c.l.b16 %v2069
        %v2130 = vunpack.c.l.b16 %v2070
        %v2131 = vunpack.c.l.b16 %v2071
        %v2132 = vunpack.c.l.b16 %v2072
        %v2133 = vunpack.c.l.b16 %v2073
        %v2134 = vunpack.c.l.b16 %v2074
        %v2135 = vunpack.c.l.b16 %v2075
        %v2136 = vunpack.c.l.b16 %v2076
        %v2137 = vunpack.c.l.b16 %v2077
        %v2138 = vunpack.c.l.b16 %v2078
        %v2139 = vunpack.c.l.b16 %v2079
        %v2140 = vunpack.c.l.b16 %v2080
        %v2141 = vunpack.c.l.b16 %v2081
        %v2142 = vunpack.c.l.b16 %v2082
        %v2143 = vunpack.c.l.b16 %v2083
        %v2144 = vpack.c.b16 %v2115, %v2114
        %v2145 = vpack.c.b16 %v2117, %v2116
        %v2146 = vpack.c.b16 %v2119, %v2118
        %v2147 = vpack.c.b16 %v2121, %v2120
        %v2148 = vpack.c.b16 %v2123, %v2122
        %v2149 = vpack.c.b16 %v2125, %v2124
        %v2150 = vpack.c.b16 %v2127, %v2126
        %v2151 = vpack.c.b16 %v2129, %v2128
        %v2152 = vpack.c.b16 %v2131, %v2130
        %v2153 = vpack.c.b16 %v2133, %v2132
        %v2154 = vpack.c.b16 %v2135, %v2134
        %v2155 = vpack.c.b16 %v2137, %v2136
        %v2156 = vpack.c.b16 %v2139, %v2138
        %v2157 = vpack.c.b16 %v2141, %v2140
        %v2158 = vpack.c.b16 %v2143, %v2142
        %2159 = vrot.lane.b32.xlu0 %v2144, 28
        %v2160 = vpop.permute.xlu0 %2159
        %2161 = vrot.lane.b32.xlu0 %v2145, 28
        %v2162 = vpop.permute.xlu0 %2161
        %2163 = vrot.lane.b32.xlu0 %v2146, 28
        %v2164 = vpop.permute.xlu0 %2163
        %2165 = vrot.lane.b32.xlu0 %v2147, 28
        %v2166 = vpop.permute.xlu0 %2165
        %2167 = vrot.lane.b32.xlu0 %v2148, 28
        %v2168 = vpop.permute.xlu0 %2167
        %2169 = vrot.lane.b32.xlu0 %v2149, 28
        %v2170 = vpop.permute.xlu0 %2169
        %2171 = vrot.lane.b32.xlu0 %v2150, 28
        %v2172 = vpop.permute.xlu0 %2171
        %2173 = vrot.lane.b32.xlu0 %v2151, 28
        %v2174 = vpop.permute.xlu0 %2173
        %2175 = vrot.lane.b32.xlu0 %v2152, 28
        %v2176 = vpop.permute.xlu0 %2175
        %2177 = vrot.lane.b32.xlu0 %v2153, 28
        %v2178 = vpop.permute.xlu0 %2177
        %2179 = vrot.lane.b32.xlu0 %v2154, 28
        %v2180 = vpop.permute.xlu0 %2179
        %2181 = vrot.lane.b32.xlu0 %v2155, 28
        %v2182 = vpop.permute.xlu0 %2181
        %2183 = vrot.lane.b32.xlu0 %v2156, 28
        %v2184 = vpop.permute.xlu0 %2183
        %2185 = vrot.lane.b32.xlu0 %v2157, 28
        %v2186 = vpop.permute.xlu0 %2185
        %2187 = vrot.lane.b32.xlu0 %v2158, 28
        %v2188 = vpop.permute.xlu0 %2187
        %vm2204 = vcmask 261344
        %2205 = vst.msk [vmem:[#allocation2] sm:$0xff] %vm2204, %v2160
        %2206 = vst.msk [vmem:[#allocation2 + $0x8] sm:$0xff] %vm2204, %v2162
        %2207 = vst.msk [vmem:[#allocation2 + $0x10] sm:$0xff] %vm2204, %v2164
        %2208 = vst.msk [vmem:[#allocation2 + $0x18] sm:$0xff] %vm2204, %v2166
        %2209 = vst.msk [vmem:[#allocation2 + $0x20] sm:$0xff] %vm2204, %v2168
        %2210 = vst.msk [vmem:[#allocation2 + $0x28] sm:$0xff] %vm2204, %v2170
        %2211 = vst.msk [vmem:[#allocation2 + $0x30] sm:$0xff] %vm2204, %v2172
        %2212 = vst.msk [vmem:[#allocation2 + $0x38] sm:$0xff] %vm2204, %v2174
        %2213 = vst.msk [vmem:[#allocation2 + $0x40] sm:$0xff] %vm2204, %v2176
        %2214 = vst.msk [vmem:[#allocation2 + $0x48] sm:$0xff] %vm2204, %v2178
        %2215 = vst.msk [vmem:[#allocation2 + $0x50] sm:$0xff] %vm2204, %v2180
        %2216 = vst.msk [vmem:[#allocation2 + $0x58] sm:$0xff] %vm2204, %v2182
        %2217 = vst.msk [vmem:[#allocation2 + $0x60] sm:$0xff] %vm2204, %v2184
        %2218 = vst.msk [vmem:[#allocation2 + $0x68] sm:$0xff] %vm2204, %v2186
        %2219 = vst.msk [vmem:[#allocation2 + $0x70] sm:$0xff] %vm2204, %v2188
        %v2220 = vld [vmem:[%s1751] sm:$0xf]
        %v2221 = vld [vmem:[%s1751 + $0x4] sm:$0xf]
        %v2222 = vld [vmem:[%s1751 + $0x8] sm:$0xf]
        %v2223 = vld [vmem:[%s1751 + $0xc] sm:$0xf]
        %v2224 = vld [vmem:[%s1751 + $0x10] sm:$0xf]
        %v2225 = vld [vmem:[%s1751 + $0x14] sm:$0xf]
        %v2226 = vld [vmem:[%s1751 + $0x18] sm:$0xf]
        %v2227 = vld [vmem:[%s1751 + $0x1c] sm:$0xf]
        %v2228 = vld [vmem:[%s1751 + $0x20] sm:$0xf]
        %v2229 = vld [vmem:[%s1751 + $0x24] sm:$0xf]
        %v2230 = vld [vmem:[%s1751 + $0x28] sm:$0xf]
        %v2231 = vld [vmem:[%s1751 + $0x2c] sm:$0xf]
        %v2232 = vld [vmem:[%s1751 + $0x30] sm:$0xf]
        %v2233 = vld [vmem:[%s1751 + $0x34] sm:$0xf]
        %v2234 = vld [vmem:[%s1751 + $0x38] sm:$0xf]
        %v2235 = vld [vmem:[%s1751 + $0x3c] sm:$0xf]
        %v2236 = vld [vmem:[%s1751 + $0x40] sm:$0xf]
        %v2237 = vld [vmem:[%s1751 + $0x44] sm:$0xf]
        %v2238 = vld [vmem:[%s1751 + $0x48] sm:$0xf]
        %v2239 = vld [vmem:[%s1751 + $0x4c] sm:$0xf]
        %v2240 = vld [vmem:[%s1751 + $0x50] sm:$0xf]
        %v2241 = vld [vmem:[%s1751 + $0x54] sm:$0xf]
        %v2242 = vld [vmem:[%s1751 + $0x58] sm:$0xf]
        %v2243 = vld [vmem:[%s1751 + $0x5c] sm:$0xf]
        %v2244 = vld [vmem:[%s1751 + $0x60] sm:$0xf]
        %v2245 = vld [vmem:[%s1751 + $0x64] sm:$0xf]
        %v2246 = vld [vmem:[%s1751 + $0x68] sm:$0xf]
        %v2247 = vld [vmem:[%s1751 + $0x6c] sm:$0xf]
        %v2248 = vld [vmem:[%s1751 + $0x70] sm:$0xf]
        %v2249 = vld [vmem:[%s1751 + $0x74] sm:$0xf]
        %v2280 = vunpack.c.l.b16 %v2220
        %v2281 = vunpack.c.l.b16 %v2221
        %v2282 = vunpack.c.l.b16 %v2222
        %v2283 = vunpack.c.l.b16 %v2223
        %v2284 = vunpack.c.l.b16 %v2224
        %v2285 = vunpack.c.l.b16 %v2225
        %v2286 = vunpack.c.l.b16 %v2226
        %v2287 = vunpack.c.l.b16 %v2227
        %v2288 = vunpack.c.l.b16 %v2228
        %v2289 = vunpack.c.l.b16 %v2229
        %v2290 = vunpack.c.l.b16 %v2230
        %v2291 = vunpack.c.l.b16 %v2231
        %v2292 = vunpack.c.l.b16 %v2232
        %v2293 = vunpack.c.l.b16 %v2233
        %v2294 = vunpack.c.l.b16 %v2234
        %v2295 = vunpack.c.l.b16 %v2235
        %v2296 = vunpack.c.l.b16 %v2236
        %v2297 = vunpack.c.l.b16 %v2237
        %v2298 = vunpack.c.l.b16 %v2238
        %v2299 = vunpack.c.l.b16 %v2239
        %v2300 = vunpack.c.l.b16 %v2240
        %v2301 = vunpack.c.l.b16 %v2241
        %v2302 = vunpack.c.l.b16 %v2242
        %v2303 = vunpack.c.l.b16 %v2243
        %v2304 = vunpack.c.l.b16 %v2244
        %v2305 = vunpack.c.l.b16 %v2245
        %v2306 = vunpack.c.l.b16 %v2246
        %v2307 = vunpack.c.l.b16 %v2247
        %v2308 = vunpack.c.l.b16 %v2248
        %v2309 = vunpack.c.l.b16 %v2249
        %v2310 = vpack.c.b16 %v2281, %v2280
        %v2311 = vpack.c.b16 %v2283, %v2282
        %v2312 = vpack.c.b16 %v2285, %v2284
        %v2313 = vpack.c.b16 %v2287, %v2286
        %v2314 = vpack.c.b16 %v2289, %v2288
        %v2315 = vpack.c.b16 %v2291, %v2290
        %v2316 = vpack.c.b16 %v2293, %v2292
        %v2317 = vpack.c.b16 %v2295, %v2294
        %v2318 = vpack.c.b16 %v2297, %v2296
        %v2319 = vpack.c.b16 %v2299, %v2298
        %v2320 = vpack.c.b16 %v2301, %v2300
        %v2321 = vpack.c.b16 %v2303, %v2302
        %v2322 = vpack.c.b16 %v2305, %v2304
        %v2323 = vpack.c.b16 %v2307, %v2306
        %v2324 = vpack.c.b16 %v2309, %v2308
        %v2326 = vshrl.u32 %v2310, 16
        %v2328 = vshll.u32 %v2310, 16
        %v2330 = vrot.slane %v2328, 1
        %v2331 = vor.u32 %v2326, %v2330
        %v2333 = vshrl.u32 %v2311, 16
        %v2335 = vshll.u32 %v2311, 16
        %v2337 = vrot.slane %v2335, 1
        %v2338 = vor.u32 %v2333, %v2337
        %v2340 = vshrl.u32 %v2312, 16
        %v2342 = vshll.u32 %v2312, 16
        %v2344 = vrot.slane %v2342, 1
        %v2345 = vor.u32 %v2340, %v2344
        %v2347 = vshrl.u32 %v2313, 16
        %v2349 = vshll.u32 %v2313, 16
        %v2351 = vrot.slane %v2349, 1
        %v2352 = vor.u32 %v2347, %v2351
        %v2354 = vshrl.u32 %v2314, 16
        %v2356 = vshll.u32 %v2314, 16
        %v2358 = vrot.slane %v2356, 1
        %v2359 = vor.u32 %v2354, %v2358
        %v2361 = vshrl.u32 %v2315, 16
        %v2363 = vshll.u32 %v2315, 16
        %v2365 = vrot.slane %v2363, 1
        %v2366 = vor.u32 %v2361, %v2365
        %v2368 = vshrl.u32 %v2316, 16
        %v2370 = vshll.u32 %v2316, 16
        %v2372 = vrot.slane %v2370, 1
        %v2373 = vor.u32 %v2368, %v2372
        %v2375 = vshrl.u32 %v2317, 16
        %v2377 = vshll.u32 %v2317, 16
        %v2379 = vrot.slane %v2377, 1
        %v2380 = vor.u32 %v2375, %v2379
        %v2382 = vshrl.u32 %v2318, 16
        %v2384 = vshll.u32 %v2318, 16
        %v2386 = vrot.slane %v2384, 1
        %v2387 = vor.u32 %v2382, %v2386
        %v2389 = vshrl.u32 %v2319, 16
        %v2391 = vshll.u32 %v2319, 16
        %v2393 = vrot.slane %v2391, 1
        %v2394 = vor.u32 %v2389, %v2393
        %v2396 = vshrl.u32 %v2320, 16
        %v2398 = vshll.u32 %v2320, 16
        %v2400 = vrot.slane %v2398, 1
        %v2401 = vor.u32 %v2396, %v2400
        %v2403 = vshrl.u32 %v2321, 16
        %v2405 = vshll.u32 %v2321, 16
        %v2407 = vrot.slane %v2405, 1
        %v2408 = vor.u32 %v2403, %v2407
        %v2410 = vshrl.u32 %v2322, 16
        %v2412 = vshll.u32 %v2322, 16
        %v2414 = vrot.slane %v2412, 1
        %v2415 = vor.u32 %v2410, %v2414
        %v2417 = vshrl.u32 %v2323, 16
        %v2419 = vshll.u32 %v2323, 16
        %v2421 = vrot.slane %v2419, 1
        %v2422 = vor.u32 %v2417, %v2421
        %v2424 = vshrl.u32 %v2324, 16
        %v2426 = vshll.u32 %v2324, 16
        %v2428 = vrot.slane %v2426, 1
        %v2429 = vor.u32 %v2424, %v2428
        %2430 = vrot.lane.b32.xlu0 %v2331, 32
        %v2431 = vpop.permute.xlu0 %2430
        %2432 = vrot.lane.b32.xlu0 %v2338, 32
        %v2433 = vpop.permute.xlu0 %2432
        %2434 = vrot.lane.b32.xlu0 %v2345, 32
        %v2435 = vpop.permute.xlu0 %2434
        %2436 = vrot.lane.b32.xlu0 %v2352, 32
        %v2437 = vpop.permute.xlu0 %2436
        %2438 = vrot.lane.b32.xlu0 %v2359, 32
        %v2439 = vpop.permute.xlu0 %2438
        %2440 = vrot.lane.b32.xlu0 %v2366, 32
        %v2441 = vpop.permute.xlu0 %2440
        %2442 = vrot.lane.b32.xlu0 %v2373, 32
        %v2443 = vpop.permute.xlu0 %2442
        %2444 = vrot.lane.b32.xlu0 %v2380, 32
        %v2445 = vpop.permute.xlu0 %2444
        %2446 = vrot.lane.b32.xlu0 %v2387, 32
        %v2447 = vpop.permute.xlu0 %2446
        %2448 = vrot.lane.b32.xlu0 %v2394, 32
        %v2449 = vpop.permute.xlu0 %2448
        %2450 = vrot.lane.b32.xlu0 %v2401, 32
        %v2451 = vpop.permute.xlu0 %2450
        %2452 = vrot.lane.b32.xlu0 %v2408, 32
        %v2453 = vpop.permute.xlu0 %2452
        %2454 = vrot.lane.b32.xlu0 %v2415, 32
        %v2455 = vpop.permute.xlu0 %2454
        %2456 = vrot.lane.b32.xlu0 %v2422, 32
        %v2457 = vpop.permute.xlu0 %2456
        %2458 = vrot.lane.b32.xlu0 %v2429, 32
        %v2459 = vpop.permute.xlu0 %2458
        %vm2475 = vcmask 294144
        %vm2476 = vmand %vm2475, %vm883
        %v2477 = vld [vmem:[#allocation2] sm:$0xff]
        %v2478 = vsel %vm2476, %v2431, %v2477
        %2479 = vst [vmem:[#allocation2] sm:$0xff] %v2478
        %v2480 = vld [vmem:[#allocation2 + $0x8] sm:$0xff]
        %v2481 = vsel %vm2476, %v2433, %v2480
        %2482 = vst [vmem:[#allocation2 + $0x8] sm:$0xff] %v2481
        %v2483 = vld [vmem:[#allocation2 + $0x10] sm:$0xff]
        %v2484 = vsel %vm2476, %v2435, %v2483
        %2485 = vst [vmem:[#allocation2 + $0x10] sm:$0xff] %v2484
        %v2486 = vld [vmem:[#allocation2 + $0x18] sm:$0xff]
        %v2487 = vsel %vm2476, %v2437, %v2486
        %2488 = vst [vmem:[#allocation2 + $0x18] sm:$0xff] %v2487
        %v2489 = vld [vmem:[#allocation2 + $0x20] sm:$0xff]
        %v2490 = vsel %vm2476, %v2439, %v2489
        %2491 = vst [vmem:[#allocation2 + $0x20] sm:$0xff] %v2490
        %v2492 = vld [vmem:[#allocation2 + $0x28] sm:$0xff]
        %v2493 = vsel %vm2476, %v2441, %v2492
        %2494 = vst [vmem:[#allocation2 + $0x28] sm:$0xff] %v2493
        %v2495 = vld [vmem:[#allocation2 + $0x30] sm:$0xff]
        %v2496 = vsel %vm2476, %v2443, %v2495
        %2497 = vst [vmem:[#allocation2 + $0x30] sm:$0xff] %v2496
        %v2498 = vld [vmem:[#allocation2 + $0x38] sm:$0xff]
        %v2499 = vsel %vm2476, %v2445, %v2498
        %2500 = vst [vmem:[#allocation2 + $0x38] sm:$0xff] %v2499
        %v2501 = vld [vmem:[#allocation2 + $0x40] sm:$0xff]
        %v2502 = vsel %vm2476, %v2447, %v2501
        %2503 = vst [vmem:[#allocation2 + $0x40] sm:$0xff] %v2502
        %v2504 = vld [vmem:[#allocation2 + $0x48] sm:$0xff]
        %v2505 = vsel %vm2476, %v2449, %v2504
        %2506 = vst [vmem:[#allocation2 + $0x48] sm:$0xff] %v2505
        %v2507 = vld [vmem:[#allocation2 + $0x50] sm:$0xff]
        %v2508 = vsel %vm2476, %v2451, %v2507
        %2509 = vst [vmem:[#allocation2 + $0x50] sm:$0xff] %v2508
        %v2510 = vld [vmem:[#allocation2 + $0x58] sm:$0xff]
        %v2511 = vsel %vm2476, %v2453, %v2510
        %2512 = vst [vmem:[#allocation2 + $0x58] sm:$0xff] %v2511
        %v2513 = vld [vmem:[#allocation2 + $0x60] sm:$0xff]
        %v2514 = vsel %vm2476, %v2455, %v2513
        %2515 = vst [vmem:[#allocation2 + $0x60] sm:$0xff] %v2514
        %v2516 = vld [vmem:[#allocation2 + $0x68] sm:$0xff]
        %v2517 = vsel %vm2476, %v2457, %v2516
        %2518 = vst [vmem:[#allocation2 + $0x68] sm:$0xff] %v2517
        %v2519 = vld [vmem:[#allocation2 + $0x70] sm:$0xff]
        %v2520 = vsel %vm2476, %v2459, %v2519
        %2521 = vst [vmem:[#allocation2 + $0x70] sm:$0xff] %v2520
        %v2522 = vld [vmem:[#allocation2] sm:$0xff]
        %v2523 = vld [vmem:[#allocation2 + $0x8] sm:$0xff]
        %v2524 = vld [vmem:[#allocation2 + $0x10] sm:$0xff]
        %v2525 = vld [vmem:[#allocation2 + $0x18] sm:$0xff]
        %v2526 = vld [vmem:[#allocation2 + $0x20] sm:$0xff]
        %v2527 = vld [vmem:[#allocation2 + $0x28] sm:$0xff]
        %v2528 = vld [vmem:[#allocation2 + $0x30] sm:$0xff]
        %v2529 = vld [vmem:[#allocation2 + $0x38] sm:$0xff]
        %v2530 = vld [vmem:[#allocation2 + $0x40] sm:$0xff]
        %v2531 = vld [vmem:[#allocation2 + $0x48] sm:$0xff]
        %v2532 = vld [vmem:[#allocation2 + $0x50] sm:$0xff]
        %v2533 = vld [vmem:[#allocation2 + $0x58] sm:$0xff]
        %v2534 = vld [vmem:[#allocation2 + $0x60] sm:$0xff]
        %v2535 = vld [vmem:[#allocation2 + $0x68] sm:$0xff]
        %v2536 = vld [vmem:[#allocation2 + $0x70] sm:$0xff]
        %v2537 = vld [vmem:[#allocation2 + $0x78] sm:$0xff]
        %v2538 = vld [vmem:[%s1] sm:$0xf]
        %v2539 = vld [vmem:[%s1 + $0x4] sm:$0xf]
        %v2540 = vld [vmem:[%s1 + $0x8] sm:$0xf]
        %v2541 = vld [vmem:[%s1 + $0xc] sm:$0xf]
        %v2542 = vld [vmem:[%s1 + $0x10] sm:$0x3]
        %v2543 = vld [vmem:[%s2] sm:$0x7]
        %v2544 = vlaneseq
        %v2545 = vshrl.u32 %v2544, 7
        %v2546 = vsub.s32 0, %v2545
        %v2547 = vrot.slane %v2543, %v2546
        %v2553 = vunpack.c.l.b16 %v2538
        %v2554 = vunpack.c.l.b16 %v2539
        %v2555 = vunpack.c.l.b16 %v2540
        %v2556 = vunpack.c.l.b16 %v2541
        %v2557 = vunpack.c.l.b16 %v2542
        %v2558 = vpack.c.b16 %v2554, %v2553
        %v2559 = vpack.c.b16 %v2556, %v2555
        %v2560 = vpack.c.b16 %v2557, %v2557
        %v2564 = vsel %vm170, %v2522, 0
        %v2567 = vsel %vm170, %v2523, 0
        %v2570 = vsel %vm170, %v2524, 0
        %v2573 = vsel %vm170, %v2525, 0
        %v2576 = vsel %vm170, %v2526, 0
        %v2579 = vsel %vm170, %v2527, 0
        %v2582 = vsel %vm170, %v2528, 0
        %v2585 = vsel %vm170, %v2529, 0
        %v2588 = vsel %vm170, %v2530, 0
        %v2591 = vsel %vm170, %v2531, 0
        %v2594 = vsel %vm170, %v2532, 0
        %v2597 = vsel %vm170, %v2533, 0
        %v2600 = vsel %vm170, %v2534, 0
        %v2603 = vsel %vm170, %v2535, 0
        %v2606 = vsel %vm170, %v2536, 0
        %v2609 = vsel %vm170, %v2537, 0
        %vm2611 = vcmask 1041408
        %v2613 = vsel %vm2611, %v2560, 0
        %2615 = vmatprep.subr.bf16.mxu0 0
        %2616 = vmatpush1.bf16.msra.mxu0 %v2558
        %2617 = vmatprep.subr.bf16.mxu0 0
        %2618 = vmatpush1.bf16.msra.mxu0 %v2559
        %2619 = vmatprep.subr.bf16.mxu0 0
        %2620 = vmatpush1.bf16.msra.mxu0 %v2613
        %2621 = vmatprep.subr.bf16.mxu0 0
        %2622 = vmatpush1.bf16.msra.mxu0 0
        %2623 = vmatprep.subr.bf16.mxu0 0
        %2624 = vmatpush1.bf16.msra.mxu0 0
        %2625 = vmatprep.subr.bf16.mxu0 0
        %2626 = vmatpush1.bf16.msra.mxu0 0
        %2627 = vmatprep.subr.bf16.mxu0 0
        %2628 = vmatpush1.bf16.msra.mxu0 0
        %2629 = vmatprep.subr.bf16.mxu0 0
        %2630 = vmatpush1.bf16.msra.mxu0 0
        %2631 = vmatprep.subr.bf16.mxu0 0
        %2632 = vmatpush1.bf16.msra.mxu0 0
        %2633 = vmatprep.subr.bf16.mxu0 0
        %2634 = vmatpush1.bf16.msra.mxu0 0
        %2635 = vmatprep.subr.bf16.mxu0 0
        %2636 = vmatpush1.bf16.msra.mxu0 0
        %2637 = vmatprep.subr.bf16.mxu0 0
        %2638 = vmatpush1.bf16.msra.mxu0 0
        %2639 = vmatprep.subr.bf16.mxu0 0
        %2640 = vmatpush1.bf16.msra.mxu0 0
        %2641 = vmatprep.subr.bf16.mxu0 0
        %2642 = vmatpush1.bf16.msra.mxu0 0
        %2643 = vmatprep.subr.bf16.mxu0 0
        %2644 = vmatpush1.bf16.msra.mxu0 0
        %2645 = vmatprep.subr.bf16.mxu0 0
        %2646 = vmatpush1.bf16.msra.mxu0 0
        %2647 = vmatprep.mubr.bf16.mxu0 0
        %2648 = vmatmul.mubr.bf16.gmra.mrb[0].mxu0 %v2564
        %v2649 = vpop.f32.mrb[0].mxu0
        %v2650 = vadd.f32 %v2547, %v2649
        %v2651 = vpop.f32.mrb[0].mxu0
        %v2652 = vpop.f32.mrb[0].mxu0
        %v2653 = vadd.f32 %v2547, %v2652
        %v2654 = vpop.f32.mrb[0].mxu0
        %2655 = vmatprep.mubr.bf16.mxu0 0
        %2656 = vmatmul.mubr.bf16.gmra.mrb[0].mxu0 %v2567
        %v2657 = vpop.f32.mrb[0].mxu0
        %v2658 = vadd.f32 %v2547, %v2657
        %v2659 = vpop.f32.mrb[0].mxu0
        %v2660 = vpop.f32.mrb[0].mxu0
        %v2661 = vadd.f32 %v2547, %v2660
        %v2662 = vpop.f32.mrb[0].mxu0
        %2663 = vmatprep.mubr.bf16.mxu0 0
        %2664 = vmatmul.mubr.bf16.gmra.mrb[0].mxu0 %v2570
        %v2665 = vpop.f32.mrb[0].mxu0
        %v2666 = vadd.f32 %v2547, %v2665
        %v2667 = vpop.f32.mrb[0].mxu0
        %v2668 = vpop.f32.mrb[0].mxu0
        %v2669 = vadd.f32 %v2547, %v2668
        %v2670 = vpop.f32.mrb[0].mxu0
        %2671 = vmatprep.mubr.bf16.mxu0 0
        %2672 = vmatmul.mubr.bf16.gmra.mrb[0].mxu0 %v2573
        %v2673 = vpop.f32.mrb[0].mxu0
        %v2674 = vadd.f32 %v2547, %v2673
        %v2675 = vpop.f32.mrb[0].mxu0
        %v2676 = vpop.f32.mrb[0].mxu0
        %v2677 = vadd.f32 %v2547, %v2676
        %v2678 = vpop.f32.mrb[0].mxu0
        %2679 = vmatprep.mubr.bf16.mxu0 0
        %2680 = vmatmul.mubr.bf16.gmra.mrb[0].mxu0 %v2576
        %v2681 = vpop.f32.mrb[0].mxu0
        %v2682 = vadd.f32 %v2547, %v2681
        %v2683 = vpop.f32.mrb[0].mxu0
        %v2684 = vpop.f32.mrb[0].mxu0
        %v2685 = vadd.f32 %v2547, %v2684
        %v2686 = vpop.f32.mrb[0].mxu0
        %2687 = vmatprep.mubr.bf16.mxu0 0
        %2688 = vmatmul.mubr.bf16.gmra.mrb[0].mxu0 %v2579
        %v2689 = vpop.f32.mrb[0].mxu0
        %v2690 = vadd.f32 %v2547, %v2689
        %v2691 = vpop.f32.mrb[0].mxu0
        %v2692 = vpop.f32.mrb[0].mxu0
        %v2693 = vadd.f32 %v2547, %v2692
        %v2694 = vpop.f32.mrb[0].mxu0
        %2695 = vmatprep.mubr.bf16.mxu0 0
        %2696 = vmatmul.mubr.bf16.gmra.mrb[0].mxu0 %v2582
        %v2697 = vpop.f32.mrb[0].mxu0
        %v2698 = vadd.f32 %v2547, %v2697
        %v2699 = vpop.f32.mrb[0].mxu0
        %v2700 = vpop.f32.mrb[0].mxu0
        %v2701 = vadd.f32 %v2547, %v2700
        %v2702 = vpop.f32.mrb[0].mxu0
        %2703 = vmatprep.mubr.bf16.mxu0 0
        %2704 = vmatmul.mubr.bf16.gmra.mrb[0].mxu0 %v2585
        %v2705 = vpop.f32.mrb[0].mxu0
        %v2706 = vadd.f32 %v2547, %v2705
        %v2707 = vpop.f32.mrb[0].mxu0
        %v2708 = vpop.f32.mrb[0].mxu0
        %v2709 = vadd.f32 %v2547, %v2708
        %v2710 = vpop.f32.mrb[0].mxu0
        %2711 = vmatprep.mubr.bf16.mxu0 0
        %2712 = vmatmul.mubr.bf16.gmra.mrb[0].mxu0 %v2588
        %v2713 = vpop.f32.mrb[0].mxu0
        %v2714 = vadd.f32 %v2547, %v2713
        %v2715 = vpop.f32.mrb[0].mxu0
        %v2716 = vpop.f32.mrb[0].mxu0
        %v2717 = vadd.f32 %v2547, %v2716
        %v2718 = vpop.f32.mrb[0].mxu0
        %2719 = vmatprep.mubr.bf16.mxu0 0
        %2720 = vmatmul.mubr.bf16.gmra.mrb[0].mxu0 %v2591
        %v2721 = vpop.f32.mrb[0].mxu0
        %v2722 = vadd.f32 %v2547, %v2721
        %v2723 = vpop.f32.mrb[0].mxu0
        %v2724 = vpop.f32.mrb[0].mxu0
        %v2725 = vadd.f32 %v2547, %v2724
        %v2726 = vpop.f32.mrb[0].mxu0
        %2727 = vmatprep.mubr.bf16.mxu0 0
        %2728 = vmatmul.mubr.bf16.gmra.mrb[0].mxu0 %v2594
        %v2729 = vpop.f32.mrb[0].mxu0
        %v2730 = vadd.f32 %v2547, %v2729
        %v2731 = vpop.f32.mrb[0].mxu0
        %v2732 = vpop.f32.mrb[0].mxu0
        %v2733 = vadd.f32 %v2547, %v2732
        %v2734 = vpop.f32.mrb[0].mxu0
        %2735 = vmatprep.mubr.bf16.mxu0 0
        %2736 = vmatmul.mubr.bf16.gmra.mrb[0].mxu0 %v2597
        %v2737 = vpop.f32.mrb[0].mxu0
        %v2738 = vadd.f32 %v2547, %v2737
        %v2739 = vpop.f32.mrb[0].mxu0
        %v2740 = vpop.f32.mrb[0].mxu0
        %v2741 = vadd.f32 %v2547, %v2740
        %v2742 = vpop.f32.mrb[0].mxu0
        %2743 = vmatprep.mubr.bf16.mxu0 0
        %2744 = vmatmul.mubr.bf16.gmra.mrb[0].mxu0 %v2600
        %v2745 = vpop.f32.mrb[0].mxu0
        %v2746 = vadd.f32 %v2547, %v2745
        %v2747 = vpop.f32.mrb[0].mxu0
        %v2748 = vpop.f32.mrb[0].mxu0
        %v2749 = vadd.f32 %v2547, %v2748
        %v2750 = vpop.f32.mrb[0].mxu0
        %2751 = vmatprep.mubr.bf16.mxu0 0
        %2752 = vmatmul.mubr.bf16.gmra.mrb[0].mxu0 %v2603
        %v2753 = vpop.f32.mrb[0].mxu0
        %v2754 = vadd.f32 %v2547, %v2753
        %v2755 = vpop.f32.mrb[0].mxu0
        %v2756 = vpop.f32.mrb[0].mxu0
        %v2757 = vadd.f32 %v2547, %v2756
        %v2758 = vpop.f32.mrb[0].mxu0
        %2759 = vmatprep.mubr.bf16.mxu0 0
        %2760 = vmatmul.mubr.bf16.gmra.mrb[0].mxu0 %v2606
        %v2761 = vpop.f32.mrb[0].mxu0
        %v2762 = vadd.f32 %v2547, %v2761
        %v2763 = vpop.f32.mrb[0].mxu0
        %v2764 = vpop.f32.mrb[0].mxu0
        %v2765 = vadd.f32 %v2547, %v2764
        %v2766 = vpop.f32.mrb[0].mxu0
        %2767 = vmatprep.mubr.bf16.mxu0 0
        %2768 = vmatmul.mubr.bf16.gmra.mrb[0].mxu0 %v2609
        %v2769 = vpop.f32.mrb[0].mxu0
        %v2770 = vadd.f32 %v2547, %v2769
        %v2771 = vpop.f32.mrb[0].mxu0
        %v2772 = vpop.f32.mrb[0].mxu0
        %v2773 = vadd.f32 %v2547, %v2772
        %v2774 = vpop.f32.mrb[0].mxu0
        %2775 = vdwg.mxu0
        %vm2776 = vcmp.gt.f32.partialorder %v2650, 0.0
        %vm2777 = vcmp.gt.f32.partialorder %v2653, 0.0
        %vm2778 = vcmp.gt.f32.partialorder %v2658, 0.0
        %vm2779 = vcmp.gt.f32.partialorder %v2661, 0.0
        %vm2780 = vcmp.gt.f32.partialorder %v2666, 0.0
        %vm2781 = vcmp.gt.f32.partialorder %v2669, 0.0
        %vm2782 = vcmp.gt.f32.partialorder %v2674, 0.0
        %vm2783 = vcmp.gt.f32.partialorder %v2677, 0.0
        %vm2784 = vcmp.gt.f32.partialorder %v2682, 0.0
        %vm2785 = vcmp.gt.f32.partialorder %v2685, 0.0
        %vm2786 = vcmp.gt.f32.partialorder %v2690, 0.0
        %vm2787 = vcmp.gt.f32.partialorder %v2693, 0.0
        %vm2788 = vcmp.gt.f32.partialorder %v2698, 0.0
        %vm2789 = vcmp.gt.f32.partialorder %v2701, 0.0
        %vm2790 = vcmp.gt.f32.partialorder %v2706, 0.0
        %vm2791 = vcmp.gt.f32.partialorder %v2709, 0.0
        %vm2792 = vcmp.gt.f32.partialorder %v2714, 0.0
        %vm2793 = vcmp.gt.f32.partialorder %v2717, 0.0
        %vm2794 = vcmp.gt.f32.partialorder %v2722, 0.0
        %vm2795 = vcmp.gt.f32.partialorder %v2725, 0.0
        %vm2796 = vcmp.gt.f32.partialorder %v2730, 0.0
        %vm2797 = vcmp.gt.f32.partialorder %v2733, 0.0
        %vm2798 = vcmp.gt.f32.partialorder %v2738, 0.0
        %vm2799 = vcmp.gt.f32.partialorder %v2741, 0.0
        %vm2800 = vcmp.gt.f32.partialorder %v2746, 0.0
        %vm2801 = vcmp.gt.f32.partialorder %v2749, 0.0
        %vm2802 = vcmp.gt.f32.partialorder %v2754, 0.0
        %vm2803 = vcmp.gt.f32.partialorder %v2757, 0.0
        %vm2804 = vcmp.gt.f32.partialorder %v2762, 0.0
        %vm2805 = vcmp.gt.f32.partialorder %v2765, 0.0
        %vm2806 = vcmp.gt.f32.partialorder %v2770, 0.0
        %vm2807 = vcmp.gt.f32.partialorder %v2773, 0.0
        %v2808 = vmul.f32 %v2650, 1.442695
        %v2809 = vpow.pop %v2808
        %v2810 = vmul.f32 %v2653, 1.442695
        %v2811 = vpow.pop %v2810
        %v2812 = vmul.f32 %v2658, 1.442695
        %v2813 = vpow.pop %v2812
        %v2814 = vmul.f32 %v2661, 1.442695
        %v2815 = vpow.pop %v2814
        %v2816 = vmul.f32 %v2666, 1.442695
        %v2817 = vpow.pop %v2816
        %v2818 = vmul.f32 %v2669, 1.442695
        %v2819 = vpow.pop %v2818
        %v2820 = vmul.f32 %v2674, 1.442695
        %v2821 = vpow.pop %v2820
        %v2822 = vmul.f32 %v2677, 1.442695
        %v2823 = vpow.pop %v2822
        %v2824 = vmul.f32 %v2682, 1.442695
        %v2825 = vpow.pop %v2824
        %v2826 = vmul.f32 %v2685, 1.442695
        %v2827 = vpow.pop %v2826
        %v2828 = vmul.f32 %v2690, 1.442695
        %v2829 = vpow.pop %v2828
        %v2830 = vmul.f32 %v2693, 1.442695
        %v2831 = vpow.pop %v2830
        %v2832 = vmul.f32 %v2698, 1.442695
        %v2833 = vpow.pop %v2832
        %v2834 = vmul.f32 %v2701, 1.442695
        %v2835 = vpow.pop %v2834
        %v2836 = vmul.f32 %v2706, 1.442695
        %v2837 = vpow.pop %v2836
        %v2838 = vmul.f32 %v2709, 1.442695
        %v2839 = vpow.pop %v2838
        %v2840 = vmul.f32 %v2714, 1.442695
        %v2841 = vpow.pop %v2840
        %v2842 = vmul.f32 %v2717, 1.442695
        %v2843 = vpow.pop %v2842
        %v2844 = vmul.f32 %v2722, 1.442695
        %v2845 = vpow.pop %v2844
        %v2846 = vmul.f32 %v2725, 1.442695
        %v2847 = vpow.pop %v2846
        %v2848 = vmul.f32 %v2730, 1.442695
        %v2849 = vpow.pop %v2848
        %v2850 = vmul.f32 %v2733, 1.442695
        %v2851 = vpow.pop %v2850
        %v2852 = vmul.f32 %v2738, 1.442695
        %v2853 = vpow.pop %v2852
        %v2854 = vmul.f32 %v2741, 1.442695
        %v2855 = vpow.pop %v2854
        %v2856 = vmul.f32 %v2746, 1.442695
        %v2857 = vpow.pop %v2856
        %v2858 = vmul.f32 %v2749, 1.442695
        %v2859 = vpow.pop %v2858
        %v2860 = vmul.f32 %v2754, 1.442695
        %v2861 = vpow.pop %v2860
        %v2862 = vmul.f32 %v2757, 1.442695
        %v2863 = vpow.pop %v2862
        %v2864 = vmul.f32 %v2762, 1.442695
        %v2865 = vpow.pop %v2864
        %v2866 = vmul.f32 %v2765, 1.442695
        %v2867 = vpow.pop %v2866
        %v2868 = vmul.f32 %v2770, 1.442695
        %v2869 = vpow.pop %v2868
        %v2870 = vmul.f32 %v2773, 1.442695
        %v2871 = vpow.pop %v2870
        %v2872 = vsub.f32 %v2809, 1.0
        %v2873 = vsub.f32 %v2811, 1.0
        %v2874 = vsub.f32 %v2813, 1.0
        %v2875 = vsub.f32 %v2815, 1.0
        %v2876 = vsub.f32 %v2817, 1.0
        %v2877 = vsub.f32 %v2819, 1.0
        %v2878 = vsub.f32 %v2821, 1.0
        %v2879 = vsub.f32 %v2823, 1.0
        %v2880 = vsub.f32 %v2825, 1.0
        %v2881 = vsub.f32 %v2827, 1.0
        %v2882 = vsub.f32 %v2829, 1.0
        %v2883 = vsub.f32 %v2831, 1.0
        %v2884 = vsub.f32 %v2833, 1.0
        %v2885 = vsub.f32 %v2835, 1.0
        %v2886 = vsub.f32 %v2837, 1.0
        %v2887 = vsub.f32 %v2839, 1.0
        %v2888 = vsub.f32 %v2841, 1.0
        %v2889 = vsub.f32 %v2843, 1.0
        %v2890 = vsub.f32 %v2845, 1.0
        %v2891 = vsub.f32 %v2847, 1.0
        %v2892 = vsub.f32 %v2849, 1.0
        %v2893 = vsub.f32 %v2851, 1.0
        %v2894 = vsub.f32 %v2853, 1.0
        %v2895 = vsub.f32 %v2855, 1.0
        %v2896 = vsub.f32 %v2857, 1.0
        %v2897 = vsub.f32 %v2859, 1.0
        %v2898 = vsub.f32 %v2861, 1.0
        %v2899 = vsub.f32 %v2863, 1.0
        %v2900 = vsub.f32 %v2865, 1.0
        %v2901 = vsub.f32 %v2867, 1.0
        %v2902 = vsub.f32 %v2869, 1.0
        %v2903 = vsub.f32 %v2871, 1.0
        %v2904 = vsel %vm2776, %v2650, %v2872
        %v2905 = vsel %vm2777, %v2653, %v2873
        %v2906 = vsel %vm2778, %v2658, %v2874
        %v2907 = vsel %vm2779, %v2661, %v2875
        %v2908 = vsel %vm2780, %v2666, %v2876
        %v2909 = vsel %vm2781, %v2669, %v2877
        %v2910 = vsel %vm2782, %v2674, %v2878
        %v2911 = vsel %vm2783, %v2677, %v2879
        %v2912 = vsel %vm2784, %v2682, %v2880
        %v2913 = vsel %vm2785, %v2685, %v2881
        %v2914 = vsel %vm2786, %v2690, %v2882
        %v2915 = vsel %vm2787, %v2693, %v2883
        %v2916 = vsel %vm2788, %v2698, %v2884
        %v2917 = vsel %vm2789, %v2701, %v2885
        %v2918 = vsel %vm2790, %v2706, %v2886
        %v2919 = vsel %vm2791, %v2709, %v2887
        %v2920 = vsel %vm2792, %v2714, %v2888
        %v2921 = vsel %vm2793, %v2717, %v2889
        %v2922 = vsel %vm2794, %v2722, %v2890
        %v2923 = vsel %vm2795, %v2725, %v2891
        %v2924 = vsel %vm2796, %v2730, %v2892
        %v2925 = vsel %vm2797, %v2733, %v2893
        %v2926 = vsel %vm2798, %v2738, %v2894
        %v2927 = vsel %vm2799, %v2741, %v2895
        %v2928 = vsel %vm2800, %v2746, %v2896
        %v2929 = vsel %vm2801, %v2749, %v2897
        %v2930 = vsel %vm2802, %v2754, %v2898
        %v2931 = vsel %vm2803, %v2757, %v2899
        %v2932 = vsel %vm2804, %v2762, %v2900
        %v2933 = vsel %vm2805, %v2765, %v2901
        %v2934 = vsel %vm2806, %v2770, %v2902
        %v2935 = vsel %vm2807, %v2773, %v2903
        %vm2936 = vcmask 130048
        %v2937 = vsel %vm2936, %v2904, 0.0
        %v2938 = vsel %vm2936, %v2905, 0.0
        %v2939 = vadd.f32 %v2937, %v2938
        %v2940 = vsel %vm2936, %v2906, 0.0
        %v2941 = vadd.f32 %v2939, %v2940
        %v2942 = vsel %vm2936, %v2907, 0.0
        %v2943 = vadd.f32 %v2941, %v2942
        %v2944 = vsel %vm2936, %v2908, 0.0
        %v2945 = vadd.f32 %v2943, %v2944
        %v2946 = vsel %vm2936, %v2909, 0.0
        %v2947 = vadd.f32 %v2945, %v2946
        %v2948 = vsel %vm2936, %v2910, 0.0
        %v2949 = vadd.f32 %v2947, %v2948
        %v2950 = vsel %vm2936, %v2911, 0.0
        %v2951 = vadd.f32 %v2949, %v2950
        %v2952 = vsel %vm2936, %v2912, 0.0
        %v2953 = vadd.f32 %v2951, %v2952
        %v2954 = vsel %vm2936, %v2913, 0.0
        %v2955 = vadd.f32 %v2953, %v2954
        %v2956 = vsel %vm2936, %v2914, 0.0
        %v2957 = vadd.f32 %v2955, %v2956
        %v2958 = vsel %vm2936, %v2915, 0.0
        %v2959 = vadd.f32 %v2957, %v2958
        %v2960 = vsel %vm2936, %v2916, 0.0
        %v2961 = vadd.f32 %v2959, %v2960
        %v2962 = vsel %vm2936, %v2917, 0.0
        %v2963 = vadd.f32 %v2961, %v2962
        %v2964 = vsel %vm2936, %v2918, 0.0
        %v2965 = vadd.f32 %v2963, %v2964
        %v2966 = vsel %vm2936, %v2919, 0.0
        %v2967 = vadd.f32 %v2965, %v2966
        %v2968 = vsel %vm2936, %v2920, 0.0
        %v2969 = vadd.f32 %v2967, %v2968
        %v2970 = vsel %vm2936, %v2921, 0.0
        %v2971 = vadd.f32 %v2969, %v2970
        %v2972 = vsel %vm2936, %v2922, 0.0
        %v2973 = vadd.f32 %v2971, %v2972
        %v2974 = vsel %vm2936, %v2923, 0.0
        %v2975 = vadd.f32 %v2973, %v2974
        %v2976 = vsel %vm2936, %v2924, 0.0
        %v2977 = vadd.f32 %v2975, %v2976
        %v2978 = vsel %vm2936, %v2925, 0.0
        %v2979 = vadd.f32 %v2977, %v2978
        %v2980 = vsel %vm2936, %v2926, 0.0
        %v2981 = vadd.f32 %v2979, %v2980
        %v2982 = vsel %vm2936, %v2927, 0.0
        %v2983 = vadd.f32 %v2981, %v2982
        %v2984 = vsel %vm2936, %v2928, 0.0
        %v2985 = vadd.f32 %v2983, %v2984
        %v2986 = vsel %vm2936, %v2929, 0.0
        %v2987 = vadd.f32 %v2985, %v2986
        %v2988 = vsel %vm2936, %v2930, 0.0
        %v2989 = vadd.f32 %v2987, %v2988
        %v2990 = vsel %vm2936, %v2931, 0.0
        %v2991 = vadd.f32 %v2989, %v2990
        %v2992 = vsel %vm2936, %v2932, 0.0
        %v2993 = vadd.f32 %v2991, %v2992
        %v2994 = vsel %vm2936, %v2933, 0.0
        %v2995 = vadd.f32 %v2993, %v2994
        %v2996 = vsel %vm2936, %v2934, 0.0
        %v2997 = vadd.f32 %v2995, %v2996
        %v2998 = vsel %vm2936, %v2935, 0.0
        %v2999 = vadd.f32 %v2997, %v2998
        %v3000 = vrot.slane %v2999, 4
        %v3001 = vadd.f32 %v2999, %v3000
        %v3002 = vrot.slane %v3001, 2
        %v3003 = vadd.f32 %v3001, %v3002
        %v3004 = vrot.slane %v3003, 1
        %v3005 = vadd.f32 %v3003, %v3004
        %v3006 = vmul.f32 %v3005, 0.00390625
        %v3007 = vmul.f32 %v2904, %v2904
        %v3008 = vmul.f32 %v2905, %v2905
        %v3009 = vmul.f32 %v2906, %v2906
        %v3010 = vmul.f32 %v2907, %v2907
        %v3011 = vmul.f32 %v2908, %v2908
        %v3012 = vmul.f32 %v2909, %v2909
        %v3013 = vmul.f32 %v2910, %v2910
        %v3014 = vmul.f32 %v2911, %v2911
        %v3015 = vmul.f32 %v2912, %v2912
        %v3016 = vmul.f32 %v2913, %v2913
        %v3017 = vmul.f32 %v2914, %v2914
        %v3018 = vmul.f32 %v2915, %v2915
        %v3019 = vmul.f32 %v2916, %v2916
        %v3020 = vmul.f32 %v2917, %v2917
        %v3021 = vmul.f32 %v2918, %v2918
        %v3022 = vmul.f32 %v2919, %v2919
        %v3023 = vmul.f32 %v2920, %v2920
        %v3024 = vmul.f32 %v2921, %v2921
        %v3025 = vmul.f32 %v2922, %v2922
        %v3026 = vmul.f32 %v2923, %v2923
        %v3027 = vmul.f32 %v2924, %v2924
        %v3028 = vmul.f32 %v2925, %v2925
        %v3029 = vmul.f32 %v2926, %v2926
        %v3030 = vmul.f32 %v2927, %v2927
        %v3031 = vmul.f32 %v2928, %v2928
        %v3032 = vmul.f32 %v2929, %v2929
        %v3033 = vmul.f32 %v2930, %v2930
        %v3034 = vmul.f32 %v2931, %v2931
        %v3035 = vmul.f32 %v2932, %v2932
        %v3036 = vmul.f32 %v2933, %v2933
        %v3037 = vmul.f32 %v2934, %v2934
        %v3038 = vmul.f32 %v2935, %v2935
        %v3039 = vsel %vm2936, %v3007, 0.0
        %v3040 = vsel %vm2936, %v3008, 0.0
        %v3041 = vadd.f32 %v3039, %v3040
        %v3042 = vsel %vm2936, %v3009, 0.0
        %v3043 = vadd.f32 %v3041, %v3042
        %v3044 = vsel %vm2936, %v3010, 0.0
        %v3045 = vadd.f32 %v3043, %v3044
        %v3046 = vsel %vm2936, %v3011, 0.0
        %v3047 = vadd.f32 %v3045, %v3046
        %v3048 = vsel %vm2936, %v3012, 0.0
        %v3049 = vadd.f32 %v3047, %v3048
        %v3050 = vsel %vm2936, %v3013, 0.0
        %v3051 = vadd.f32 %v3049, %v3050
        %v3052 = vsel %vm2936, %v3014, 0.0
        %v3053 = vadd.f32 %v3051, %v3052
        %v3054 = vsel %vm2936, %v3015, 0.0
        %v3055 = vadd.f32 %v3053, %v3054
        %v3056 = vsel %vm2936, %v3016, 0.0
        %v3057 = vadd.f32 %v3055, %v3056
        %v3058 = vsel %vm2936, %v3017, 0.0
        %v3059 = vadd.f32 %v3057, %v3058
        %v3060 = vsel %vm2936, %v3018, 0.0
        %v3061 = vadd.f32 %v3059, %v3060
        %v3062 = vsel %vm2936, %v3019, 0.0
        %v3063 = vadd.f32 %v3061, %v3062
        %v3064 = vsel %vm2936, %v3020, 0.0
        %v3065 = vadd.f32 %v3063, %v3064
        %v3066 = vsel %vm2936, %v3021, 0.0
        %v3067 = vadd.f32 %v3065, %v3066
        %v3068 = vsel %vm2936, %v3022, 0.0
        %v3069 = vadd.f32 %v3067, %v3068
        %v3070 = vsel %vm2936, %v3023, 0.0
        %v3071 = vadd.f32 %v3069, %v3070
        %v3072 = vsel %vm2936, %v3024, 0.0
        %v3073 = vadd.f32 %v3071, %v3072
        %v3074 = vsel %vm2936, %v3025, 0.0
        %v3075 = vadd.f32 %v3073, %v3074
        %v3076 = vsel %vm2936, %v3026, 0.0
        %v3077 = vadd.f32 %v3075, %v3076
        %v3078 = vsel %vm2936, %v3027, 0.0
        %v3079 = vadd.f32 %v3077, %v3078
        %v3080 = vsel %vm2936, %v3028, 0.0
        %v3081 = vadd.f32 %v3079, %v3080
        %v3082 = vsel %vm2936, %v3029, 0.0
        %v3083 = vadd.f32 %v3081, %v3082
        %v3084 = vsel %vm2936, %v3030, 0.0
        %v3085 = vadd.f32 %v3083, %v3084
        %v3086 = vsel %vm2936, %v3031, 0.0
        %v3087 = vadd.f32 %v3085, %v3086
        %v3088 = vsel %vm2936, %v3032, 0.0
        %v3089 = vadd.f32 %v3087, %v3088
        %v3090 = vsel %vm2936, %v3033, 0.0
        %v3091 = vadd.f32 %v3089, %v3090
        %v3092 = vsel %vm2936, %v3034, 0.0
        %v3093 = vadd.f32 %v3091, %v3092
        %v3094 = vsel %vm2936, %v3035, 0.0
        %v3095 = vadd.f32 %v3093, %v3094
        %v3096 = vsel %vm2936, %v3036, 0.0
        %v3097 = vadd.f32 %v3095, %v3096
        %v3098 = vsel %vm2936, %v3037, 0.0
        %v3099 = vadd.f32 %v3097, %v3098
        %v3100 = vsel %vm2936, %v3038, 0.0
        %v3101 = vadd.f32 %v3099, %v3100
        %v3102 = vrot.slane %v3101, 4
        %v3103 = vadd.f32 %v3101, %v3102
        %v3104 = vrot.slane %v3103, 2
        %v3105 = vadd.f32 %v3103, %v3104
        %v3106 = vrot.slane %v3105, 1
        %v3107 = vadd.f32 %v3105, %v3106
        %v3108 = vmul.f32 %v3107, 0.00390625
        %v3109 = vmul.f32 %v3006, %v3006
        %v3110 = vsub.f32 %v3108, %v3109
        %v3111 = vmax.f32 %v3110, 0.0
        %v3112 = vadd.f32 %v3111, 1e-05
        %v3113 = vrsqrt.pop %v3112
        %v3114 = vmul.f32 %v3113, %v2543
        %v3115 = vmul.f32 %v3006, %v3114
        %v3117 = vrot.slane %v3115, 7
        %v3119 = vsub.f32 %v2543, %v3117
        %v3120 = vlaneseq
        %v3121 = vshrl.u32 %v3120, 7
        %v3122 = vsub.s32 1, %v3121
        %v3123 = vrot.slane %v3114, %v3122
        %v3124 = vmul.f32 %v2904, %v3123
        %v3125 = vmul.f32 %v2905, %v3123
        %v3126 = vmul.f32 %v2906, %v3123
        %v3127 = vmul.f32 %v2907, %v3123
        %v3128 = vmul.f32 %v2908, %v3123
        %v3129 = vmul.f32 %v2909, %v3123
        %v3130 = vmul.f32 %v2910, %v3123
        %v3131 = vmul.f32 %v2911, %v3123
        %v3132 = vmul.f32 %v2912, %v3123
        %v3133 = vmul.f32 %v2913, %v3123
        %v3134 = vmul.f32 %v2914, %v3123
        %v3135 = vmul.f32 %v2915, %v3123
        %v3136 = vmul.f32 %v2916, %v3123
        %v3137 = vmul.f32 %v2917, %v3123
        %v3138 = vmul.f32 %v2918, %v3123
        %v3139 = vmul.f32 %v2919, %v3123
        %v3140 = vmul.f32 %v2920, %v3123
        %v3141 = vmul.f32 %v2921, %v3123
        %v3142 = vmul.f32 %v2922, %v3123
        %v3143 = vmul.f32 %v2923, %v3123
        %v3144 = vmul.f32 %v2924, %v3123
        %v3145 = vmul.f32 %v2925, %v3123
        %v3146 = vmul.f32 %v2926, %v3123
        %v3147 = vmul.f32 %v2927, %v3123
        %v3148 = vmul.f32 %v2928, %v3123
        %v3149 = vmul.f32 %v2929, %v3123
        %v3150 = vmul.f32 %v2930, %v3123
        %v3151 = vmul.f32 %v2931, %v3123
        %v3152 = vmul.f32 %v2932, %v3123
        %v3153 = vmul.f32 %v2933, %v3123
        %v3154 = vmul.f32 %v2934, %v3123
        %v3155 = vmul.f32 %v2935, %v3123
        %v3156 = vlaneseq
        %v3157 = vshrl.u32 %v3156, 7
        %v3158 = vsub.s32 2, %v3157
        %v3159 = vrot.slane %v3119, %v3158
        %v3160 = vadd.f32 %v3124, %v3159
        %v3161 = vadd.f32 %v3125, %v3159
        %v3162 = vadd.f32 %v3126, %v3159
        %v3163 = vadd.f32 %v3127, %v3159
        %v3164 = vadd.f32 %v3128, %v3159
        %v3165 = vadd.f32 %v3129, %v3159
        %v3166 = vadd.f32 %v3130, %v3159
        %v3167 = vadd.f32 %v3131, %v3159
        %v3168 = vadd.f32 %v3132, %v3159
        %v3169 = vadd.f32 %v3133, %v3159
        %v3170 = vadd.f32 %v3134, %v3159
        %v3171 = vadd.f32 %v3135, %v3159
        %v3172 = vadd.f32 %v3136, %v3159
        %v3173 = vadd.f32 %v3137, %v3159
        %v3174 = vadd.f32 %v3138, %v3159
        %v3175 = vadd.f32 %v3139, %v3159
        %v3176 = vadd.f32 %v3140, %v3159
        %v3177 = vadd.f32 %v3141, %v3159
        %v3178 = vadd.f32 %v3142, %v3159
        %v3179 = vadd.f32 %v3143, %v3159
        %v3180 = vadd.f32 %v3144, %v3159
        %v3181 = vadd.f32 %v3145, %v3159
        %v3182 = vadd.f32 %v3146, %v3159
        %v3183 = vadd.f32 %v3147, %v3159
        %v3184 = vadd.f32 %v3148, %v3159
        %v3185 = vadd.f32 %v3149, %v3159
        %v3186 = vadd.f32 %v3150, %v3159
        %v3187 = vadd.f32 %v3151, %v3159
        %v3188 = vadd.f32 %v3152, %v3159
        %v3189 = vadd.f32 %v3153, %v3159
        %v3190 = vadd.f32 %v3154, %v3159
        %v3191 = vadd.f32 %v3155, %v3159
        %3192 = vxpose.xlu0.b32.start [1/16] %v3160, 128
        %3193 = vxpose.xlu0.b32.cont [2/16] %v3161, 128
        %3194 = vxpose.xlu0.b32.cont [3/16] %v3162, 128
        %3195 = vxpose.xlu0.b32.cont [4/16] %v3163, 128
        %3196 = vxpose.xlu0.b32.cont [5/16] %v3164, 128
        %3197 = vxpose.xlu0.b32.cont [6/16] %v3165, 128
        %3198 = vxpose.xlu0.b32.cont [7/16] %v3166, 128
        %3199 = vxpose.xlu0.b32.cont [8/16] %v3167, 128
        %3200 = vxpose.xlu0.b32.cont [9/16] %v3168, 128
        %3201 = vxpose.xlu0.b32.cont [10/16] %v3169, 128
        %3202 = vxpose.xlu0.b32.cont [11/16] %v3170, 128
        %3203 = vxpose.xlu0.b32.cont [12/16] %v3171, 128
        %3204 = vxpose.xlu0.b32.cont [13/16] %v3172, 128
        %3205 = vxpose.xlu0.b32.cont [14/16] %v3173, 128
        %3206 = vxpose.xlu0.b32.cont [15/16] %v3174, 128
        %3207 = vxpose.xlu0.b32.end [16/16] %v3175, 128
        %v3208 = vpop.trf.xlu0
        %v3209 = vpop.trf.xlu0
        %v3210 = vpop.trf.xlu0
        %v3211 = vpop.trf.xlu0
        %v3212 = vpop.trf.xlu0
        %v3213 = vpop.trf.xlu0
        %v3214 = vpop.trf.xlu0
        %v3215 = vpop.trf.xlu0
        %v3216 = vpop.trf.xlu0
        %v3217 = vpop.trf.xlu0
        %v3218 = vpop.trf.xlu0
        %v3219 = vpop.trf.xlu0
        %v3220 = vpop.trf.xlu0
        %v3221 = vpop.trf.xlu0
        %v3222 = vpop.trf.xlu0
        %v3223 = vpop.trf.xlu0
        %3224 = vxpose.xlu0.b32.start [1/16] %v3176, 128
        %3225 = vxpose.xlu0.b32.cont [2/16] %v3177, 128
        %3226 = vxpose.xlu0.b32.cont [3/16] %v3178, 128
        %3227 = vxpose.xlu0.b32.cont [4/16] %v3179, 128
        %3228 = vxpose.xlu0.b32.cont [5/16] %v3180, 128
        %3229 = vxpose.xlu0.b32.cont [6/16] %v3181, 128
        %3230 = vxpose.xlu0.b32.cont [7/16] %v3182, 128
        %3231 = vxpose.xlu0.b32.cont [8/16] %v3183, 128
        %3232 = vxpose.xlu0.b32.cont [9/16] %v3184, 128
        %3233 = vxpose.xlu0.b32.cont [10/16] %v3185, 128
        %3234 = vxpose.xlu0.b32.cont [11/16] %v3186, 128
        %3235 = vxpose.xlu0.b32.cont [12/16] %v3187, 128
        %3236 = vxpose.xlu0.b32.cont [13/16] %v3188, 128
        %3237 = vxpose.xlu0.b32.cont [14/16] %v3189, 128
        %3238 = vxpose.xlu0.b32.cont [15/16] %v3190, 128
        %3239 = vxpose.xlu0.b32.end [16/16] %v3191, 128
        %v3240 = vpop.trf.xlu0
        %v3241 = vpop.trf.xlu0
        %v3242 = vpop.trf.xlu0
        %v3243 = vpop.trf.xlu0
        %v3244 = vpop.trf.xlu0
        %v3245 = vpop.trf.xlu0
        %v3246 = vpop.trf.xlu0
        %v3247 = vpop.trf.xlu0
        %v3248 = vpop.trf.xlu0
        %v3249 = vpop.trf.xlu0
        %v3250 = vpop.trf.xlu0
        %v3251 = vpop.trf.xlu0
        %v3252 = vpop.trf.xlu0
        %v3253 = vpop.trf.xlu0
        %v3254 = vpop.trf.xlu0
        %v3255 = vpop.trf.xlu0
        %3256 = vst [vmem:[%s163] sm:$0xff] %v3208
        %3257 = vst [vmem:[%s163 + $0x8] sm:$0xff] %v3240
        %3258 = vst [vmem:[%s163 + $0x10] sm:$0xff] %v3209
        %3259 = vst [vmem:[%s163 + $0x18] sm:$0xff] %v3241
        %s3260 = sand.u32 %s93, 1
        %s3261 = scalar_lea.sflag [#allocation4], %s3260
        %s3262 = sand.u32 %s93, 1
        %s3263 = smul.addr %s3262, 32
        %s3264 = scalar_lea.vmem [#allocation3], %s3263
        // Predicated region
        $region33: #{tpu_custom_call.1} parent=31 // pred_check
          %p3265 = pneg %p103
        $region34: #{tpu_custom_call.1} parent=31 // pred_check_branch
          %3267 = sbr.rel (%p3265) target = $region36
        $region35: #{tpu_custom_call.1} parent=31 // pred_region
          %s3269 = ssub.s32 512, 512
          %3270 = vsyncadd %s3261, %s3269
          %s3271 = smul.addr %s17, 4
          %s3272 = smul.addr %s3271, 128
          %s3273 = scalar_lea.hbm %s3, %s3272
          %s3274 = sshll.u32 %s3264, 4
          %s3275 = int_to_ptr.vmem [resolvable:$true] %s3274
          %3280 = dma.vmem_to_hbm [thread:$0]  %s3275, 512, %s3273, %s3261, 256, 256, 16
        $region36: #{tpu_custom_call.1} parent=31 // pred_fallthru
          _
      $region32: #{tpu_custom_call.1} parent=5 // pred_fallthru
        _
      %p3281 = scmp.le.s32.totalorder 2, %s12
      // Predicated region
      $region37: #{tpu_custom_call.1} parent=5 // pred_check
        %p3282 = pneg %p3281
      $region38: #{tpu_custom_call.1} parent=5 // pred_check_branch
        %3284 = sbr.rel (%p3282) target = $region40
      $region39: #{tpu_custom_call.1} parent=5 // pred_region
        %s3285 = ssub.s32 %s12, 2
        // Predicated region
        $region41: #{tpu_custom_call.1} parent=39 // pred_check
          %p3286 = pneg %p109
        $region42: #{tpu_custom_call.1} parent=39 // pred_check_branch
          %3288 = sbr.rel (%p3286) target = $region44
        $region43: #{tpu_custom_call.1} parent=39 // pred_region
          %s3289 = sand.u32 %s94, 1
          %s3290 = scalar_lea.sflag [#allocation4], %s3289
          %s3291 = sand.u32 %s94, 1
          %s3292 = smul.addr %s3291, 32
          %s3293 = scalar_lea.vmem [#allocation3], %s3292
          %3294 = dma.done %s3290, 512
        $region44: #{tpu_custom_call.1} parent=39 // pred_fallthru
          _
      $region40: #{tpu_custom_call.1} parent=5 // pred_fallthru
        _
    $region6: #{tpu_custom_call.1} parent=1 // loop_footer
      %s16 = sadd.s32 1, %s12
    $region7: #{tpu_custom_call.1} parent=1 // loop_footer_branch
      %11 = sbr.rel target = $region3
    $region8: #{tpu_custom_call.1} parent=1 // loop_exit
      _
    %3295 = vsyncpa [#allocation4], 1
    %s3296 = scalar_lea.sflag [#allocation4], 1
    %3297 = vsyncpa %s3296, 1

</llo_original>
